<compile_context>
chip_gen: v7x
topology: tpu7x:2x2x1
jax: 0.10.0
libtpu: 0.0.40
codegen_flags: <defaults>
</compile_context>

<pallas_src>
import functools

import jax
import jax.numpy as jnp
from jax.experimental import pallas as pl
from jax.experimental.pallas import tpu as pltpu

EPS = 1e-5


def _convblock_kernel(x_ref, su_ref, sd_ref, wk1_ref, wk2_ref, rep_ref,
                      g1_ref, b1_ref, g2_ref, b2_ref, out_ref, *, inv_m):
    """Whole ConvBlock forward, everything in the lane-dense slab layout.

    x_ref   : (N*H, W*Cin)        input slab
    su/sd   : (N*H, N*H)          0/1 row-shift matrices (ky = 0 / 2 taps)
    wk1_ref : (3, W*Cin,  W*Cout) conv1 banded slab weights (per ky)
    wk2_ref : (3, W*Cout, W*Cout) conv2 banded slab weights (per ky)
    rep_ref : (W*Cout, W*Cout)    0/1 fold+broadcast matrix for channel stats
    g*/b*   : (1, W*Cout)         BN gamma / beta, pre-replicated across W
    out_ref : (N*H, W*Cout)       lane-dense output slab
    """
    su = su_ref[...]
    sd = sd_ref[...]
    rep = rep_ref[...]
    nh = x_ref.shape[0]
    ones_row = jnp.ones((1, nh), jnp.float32)

    def conv3x3(slab, wk_ref):
        # Height shift (+ its zero halo) via MXU; width taps + width halo are
        # baked into the banded slab weights.
        up = jnp.dot(su, slab, preferred_element_type=jnp.float32)
        dn = jnp.dot(sd, slab, preferred_element_type=jnp.float32)
        y = jnp.dot(up, wk_ref[0], preferred_element_type=jnp.float32)
        y = y + jnp.dot(slab, wk_ref[1], preferred_element_type=jnp.float32)
        y = y + jnp.dot(dn, wk_ref[2], preferred_element_type=jnp.float32)
        return y

    def bn_relu(y, g_rep, b_rep):
        # Per-channel batch stats on the MXU, delivered already replicated
        # across the W lane copies of each channel (slab lane layout).
        ch_sum = jnp.dot(
            jnp.dot(ones_row, y, preferred_element_type=jnp.float32),
            rep, preferred_element_type=jnp.float32)
        ch_sq = jnp.dot(
            jnp.dot(ones_row, y * y, preferred_element_type=jnp.float32),
            rep, preferred_element_type=jnp.float32)
        mean = ch_sum * inv_m
        var = ch_sq * inv_m - mean * mean          # biased variance (training BN)
        scale = g_rep * jax.lax.rsqrt(var + EPS)
        shift = b_rep - mean * scale
        return jnp.maximum(y * scale + shift, 0.0)

    y1 = bn_relu(conv3x3(x_ref[...], wk1_ref), g1_ref[...], b1_ref[...])
    out_ref[...] = bn_relu(conv3x3(y1, wk2_ref), g2_ref[...], b2_ref[...])


# ----------------------- wrapper-side constant prep -----------------------
def _banded_slab_weights(w_oihw, wd):
    """OIHW (Cout, Cin, 3, 3) -> (3, wd*Cin, wd*Cout) block-tridiagonal mats.

    mats[ky][wi*Cin + ci, wo*Cout + co] = w[co, ci, ky, wi - wo + 1] if
    |wi - wo| <= 1, else 0 (kx taps + width zero-padding in the band).
    """
    cout, cin = w_oihw.shape[0], w_oihw.shape[1]
    d = jnp.arange(wd)[:, None] - jnp.arange(wd)[None, :]          # wi - wo
    kx = jnp.clip(d + 1, 0, 2)
    band = (jnp.abs(d) <= 1)[:, :, None, None]
    w_k = jnp.transpose(w_oihw, (2, 3, 1, 0)).astype(jnp.float32)  # (ky,kx,Cin,Cout)
    mats = []
    for ky in range(3):
        blocks = jnp.where(band, w_k[ky][kx], 0.0)                 # (wd,wd,Cin,Cout)
        mats.append(
            jnp.transpose(blocks, (0, 2, 1, 3)).reshape(wd * cin, wd * cout))
    return jnp.stack(mats, axis=0)


def _row_shift_mats(n, h):
    """(N*H, N*H) 0/1 matrices: (S_up@x)[n*H+h]=x[n*H+h-1], (S_dn@x)[..]=x[..+1],
    zero at the height halo (no cross-sample leakage)."""
    r = jnp.arange(n * h)
    hh = r % h
    up = ((r[:, None] - 1 == r[None, :]) & (hh[:, None] > 0)).astype(jnp.float32)
    dn = ((r[:, None] + 1 == r[None, :]) & (hh[:, None] < h - 1)).astype(jnp.float32)
    return up, dn


def conv_block_forward(x_nchw, params):
    """Wrapper: NCHW in, NCHW out (matches the PyTorch module)."""
    w1, b1, g1, be1, w2, b2, g2, be2 = params
    n, cin, h, w = x_nchw.shape
    cout = w1.shape[0]
    nh = n * h

    # NCHW -> lane-dense slab (N*H, W*Cin): rows = (n, h), lanes = (w, c).
    x_slab = jnp.transpose(x_nchw, (0, 2, 3, 1)).astype(jnp.float32)
    x_slab = x_slab.reshape(nh, w * cin)

    wk1 = _banded_slab_weights(w1, w)                  # (3, W*Cin,  W*Cout)
    wk2 = _banded_slab_weights(w2, w)                  # (3, W*Cout, W*Cout)
    s_up, s_dn = _row_shift_mats(n, h)                 # (N*H, N*H)
    rep = jnp.tile(jnp.eye(cout, dtype=jnp.float32), (w, w))   # (W*Cout, W*Cout)

    lane_rep = lambda v: jnp.tile(v.astype(jnp.float32), w).reshape(1, w * cout)
    # Conv biases b1/b2 are NOT passed to the kernel: training-mode BatchNorm
    # subtracts the batch mean, which cancels them exactly.

    kernel = functools.partial(_convblock_kernel, inv_m=1.0 / float(n * h * w))

    out_slab = pl.pallas_call(
        kernel,
        out_shape=jax.ShapeDtypeStruct((nh, w * cout), jnp.float32),
        in_specs=[pl.BlockSpec(memory_space=pltpu.MemorySpace.VMEM)] * 10,
        out_specs=pl.BlockSpec(memory_space=pltpu.MemorySpace.VMEM),
    )(x_slab, s_up, s_dn, wk1, wk2, rep,
      lane_rep(g1), lane_rep(be1), lane_rep(g2), lane_rep(be2))

    out_nhwc = out_slab.reshape(n, h, w, cout)
    return jnp.transpose(out_nhwc, (0, 3, 1, 2))                  # back to NCHW


# ----------------------- pure-JAX reference -----------------------
def conv_block_ref(x, params):
    w1, b1, g1, be1, w2, b2, g2, be2 = params

    def conv(x, w, b):
        y = jax.lax.conv_general_dilated(
            x, w, window_strides=(1, 1), padding=((1, 1), (1, 1)),
            dimension_numbers=('NCHW', 'OIHW', 'NCHW'))
        return y + b[None, :, None, None]

    def bn_relu(y, g, be):
        m = jnp.mean(y, axis=(0, 2, 3), keepdims=True)
        v = jnp.mean((y - m) ** 2, axis=(0, 2, 3), keepdims=True)
        y = (y - m) * jax.lax.rsqrt(v + EPS) * g[None, :, None, None] \
            + be[None, :, None, None]
        return jnp.maximum(y, 0.0)

    y = bn_relu(conv(x, w1, b1), g1, be1)
    return bn_relu(conv(y, w2, b2), g2, be2)


if __name__ == "__main__":
    N, Cin, Cout, H, W = 2, 4, 8, 16, 16

    key = jax.random.PRNGKey(0)
    k = jax.random.split(key, 9)
    bound1 = 1.0 / (Cin * 9) ** 0.5
    bound2 = 1.0 / (Cout * 9) ** 0.5
    # Conv weights in PyTorch OIHW layout, deterministic init.
    w1 = jax.random.uniform(k[0], (Cout, Cin, 3, 3), jnp.float32, -bound1, bound1)
    b1 = jax.random.uniform(k[1], (Cout,), jnp.float32, -bound1, bound1)
    w2 = jax.random.uniform(k[2], (Cout, Cout, 3, 3), jnp.float32, -bound2, bound2)
    b2 = jax.random.uniform(k[3], (Cout,), jnp.float32, -bound2, bound2)
    # BN affine params (deterministic; PyTorch default would be gamma=1, beta=0).
    g1 = 1.0 + 0.1 * jax.random.normal(k[4], (Cout,), jnp.float32)
    be1 = 0.1 * jax.random.normal(k[5], (Cout,), jnp.float32)
    g2 = 1.0 + 0.1 * jax.random.normal(k[6], (Cout,), jnp.float32)
    be2 = 0.1 * jax.random.normal(k[7], (Cout,), jnp.float32)
    params = (w1, b1, g1, be1, w2, b2, g2, be2)

    x = jax.random.normal(k[8], (N, Cin, H, W), jnp.float32)

    out = jax.block_until_ready(conv_block_forward(x, params))
    ref = jax.block_until_ready(conv_block_ref(x, params))

    assert out.shape == (N, Cout, H, W), out.shape
    assert jnp.allclose(out, ref, rtol=1e-3, atol=1e-3), \
        float(jnp.max(jnp.abs(out - ref)))
    print("KERNEL_OK")
</pallas_src>

<mosaic_0001>
module attributes {stable_mosaic.version = 11 : i64} {
  func.func @_convblock_kernel(%arg0: memref<32x64xf32, #tpu.memory_space<vmem>>, %arg1: memref<32x32xf32, #tpu.memory_space<vmem>>, %arg2: memref<32x32xf32, #tpu.memory_space<vmem>>, %arg3: memref<3x64x128xf32, #tpu.memory_space<vmem>>, %arg4: memref<3x128x128xf32, #tpu.memory_space<vmem>>, %arg5: memref<128x128xf32, #tpu.memory_space<vmem>>, %arg6: memref<1x128xf32, #tpu.memory_space<vmem>>, %arg7: memref<1x128xf32, #tpu.memory_space<vmem>>, %arg8: memref<1x128xf32, #tpu.memory_space<vmem>>, %arg9: memref<1x128xf32, #tpu.memory_space<vmem>>, %arg10: memref<32x128xf32, #tpu.memory_space<vmem>>) attributes {dimension_semantics = [], scalar_prefetch = 0 : i64, scratch_operands = 0 : i64, tpu.core_type = #tpu.core_type<tc>} {
    %c0 = arith.constant 0 : index
    %c0_0 = arith.constant 0 : index
    %0 = vector.load %arg1[%c0, %c0_0] : memref<32x32xf32, #tpu.memory_space<vmem>>, vector<32x32xf32>
    %c0_1 = arith.constant 0 : index
    %c0_2 = arith.constant 0 : index
    %1 = vector.load %arg2[%c0_1, %c0_2] : memref<32x32xf32, #tpu.memory_space<vmem>>, vector<32x32xf32>
    %c0_3 = arith.constant 0 : index
    %c0_4 = arith.constant 0 : index
    %2 = vector.load %arg5[%c0_3, %c0_4] : memref<128x128xf32, #tpu.memory_space<vmem>>, vector<128x128xf32>
    %cst = arith.constant 1.000000e+00 : f32
    %3 = vector.broadcast %cst : f32 to vector<1x32xf32>
    %c0_5 = arith.constant 0 : index
    %c0_6 = arith.constant 0 : index
    %4 = vector.load %arg0[%c0_5, %c0_6] : memref<32x64xf32, #tpu.memory_space<vmem>>, vector<32x64xf32>
    %cst_7 = arith.constant dense<0.000000e+00> : vector<32x64xf32>
    %5 = tpu.matmul %0, %4, %cst_7 {dimension_numbers = #tpu.dot_dimension_numbers<[1], [0], [0], [1], [0, 0, 1, 1], [], []>} : vector<32x32xf32>, vector<32x64xf32>, vector<32x64xf32> -> vector<32x64xf32>
    %cst_8 = arith.constant dense<0.000000e+00> : vector<32x64xf32>
    %6 = tpu.matmul %1, %4, %cst_8 {dimension_numbers = #tpu.dot_dimension_numbers<[1], [0], [0], [1], [0, 0, 1, 1], [], []>} : vector<32x32xf32>, vector<32x64xf32>, vector<32x64xf32> -> vector<32x64xf32>
    %c0_9 = arith.constant 0 : index
    %c0_10 = arith.constant 0 : index
    %c0_11 = arith.constant 0 : index
    %7 = vector.load %arg3[%c0_9, %c0_10, %c0_11] : memref<3x64x128xf32, #tpu.memory_space<vmem>>, vector<1x64x128xf32>
    %8 = vector.shape_cast %7 : vector<1x64x128xf32> to vector<64x128xf32>
    %cst_12 = arith.constant dense<0.000000e+00> : vector<32x128xf32>
    %9 = tpu.matmul %5, %8, %cst_12 {dimension_numbers = #tpu.dot_dimension_numbers<[1], [0], [0], [1], [0, 0, 1, 1], [], []>} : vector<32x64xf32>, vector<64x128xf32>, vector<32x128xf32> -> vector<32x128xf32>
    %c1 = arith.constant 1 : index
    %c0_13 = arith.constant 0 : index
    %c0_14 = arith.constant 0 : index
    %10 = vector.load %arg3[%c1, %c0_13, %c0_14] : memref<3x64x128xf32, #tpu.memory_space<vmem>>, vector<1x64x128xf32>
    %11 = vector.shape_cast %10 : vector<1x64x128xf32> to vector<64x128xf32>
    %cst_15 = arith.constant dense<0.000000e+00> : vector<32x128xf32>
    %12 = tpu.matmul %4, %11, %cst_15 {dimension_numbers = #tpu.dot_dimension_numbers<[1], [0], [0], [1], [0, 0, 1, 1], [], []>} : vector<32x64xf32>, vector<64x128xf32>, vector<32x128xf32> -> vector<32x128xf32>
    %13 = arith.addf %9, %12 : vector<32x128xf32>
    %c2 = arith.constant 2 : index
    %c0_16 = arith.constant 0 : index
    %c0_17 = arith.constant 0 : index
    %14 = vector.load %arg3[%c2, %c0_16, %c0_17] : memref<3x64x128xf32, #tpu.memory_space<vmem>>, vector<1x64x128xf32>
    %15 = vector.shape_cast %14 : vector<1x64x128xf32> to vector<64x128xf32>
    %cst_18 = arith.constant dense<0.000000e+00> : vector<32x128xf32>
    %16 = tpu.matmul %6, %15, %cst_18 {dimension_numbers = #tpu.dot_dimension_numbers<[1], [0], [0], [1], [0, 0, 1, 1], [], []>} : vector<32x64xf32>, vector<64x128xf32>, vector<32x128xf32> -> vector<32x128xf32>
    %17 = arith.addf %13, %16 : vector<32x128xf32>
    %c0_19 = arith.constant 0 : index
    %c0_20 = arith.constant 0 : index
    %18 = vector.load %arg6[%c0_19, %c0_20] : memref<1x128xf32, #tpu.memory_space<vmem>>, vector<1x128xf32>
    %c0_21 = arith.constant 0 : index
    %c0_22 = arith.constant 0 : index
    %19 = vector.load %arg7[%c0_21, %c0_22] : memref<1x128xf32, #tpu.memory_space<vmem>>, vector<1x128xf32>
    %cst_23 = arith.constant dense<0.000000e+00> : vector<1x128xf32>
    %20 = tpu.matmul %3, %17, %cst_23 {dimension_numbers = #tpu.dot_dimension_numbers<[1], [0], [0], [1], [0, 0, 1, 1], [], []>} : vector<1x32xf32>, vector<32x128xf32>, vector<1x128xf32> -> vector<1x128xf32>
    %cst_24 = arith.constant dense<0.000000e+00> : vector<1x128xf32>
    %21 = tpu.matmul %20, %2, %cst_24 {dimension_numbers = #tpu.dot_dimension_numbers<[1], [0], [0], [1], [0, 0, 1, 1], [], []>} : vector<1x128xf32>, vector<128x128xf32>, vector<1x128xf32> -> vector<1x128xf32>
    %22 = arith.mulf %17, %17 : vector<32x128xf32>
    %cst_25 = arith.constant dense<0.000000e+00> : vector<1x128xf32>
    %23 = tpu.matmul %3, %22, %cst_25 {dimension_numbers = #tpu.dot_dimension_numbers<[1], [0], [0], [1], [0, 0, 1, 1], [], []>} : vector<1x32xf32>, vector<32x128xf32>, vector<1x128xf32> -> vector<1x128xf32>
    %cst_26 = arith.constant dense<0.000000e+00> : vector<1x128xf32>
    %24 = tpu.matmul %23, %2, %cst_26 {dimension_numbers = #tpu.dot_dimension_numbers<[1], [0], [0], [1], [0, 0, 1, 1], [], []>} : vector<1x128xf32>, vector<128x128xf32>, vector<1x128xf32> -> vector<1x128xf32>
    %cst_27 = arith.constant 0.001953125 : f32
    %25 = vector.broadcast %cst_27 : f32 to vector<1x128xf32>
    %26 = arith.mulf %21, %25 : vector<1x128xf32>
    %cst_28 = arith.constant 0.001953125 : f32
    %27 = vector.broadcast %cst_28 : f32 to vector<1x128xf32>
    %28 = arith.mulf %24, %27 : vector<1x128xf32>
    %29 = arith.mulf %26, %26 : vector<1x128xf32>
    %30 = arith.subf %28, %29 : vector<1x128xf32>
    %cst_29 = arith.constant 9.99999974E-6 : f32
    %31 = vector.broadcast %cst_29 : f32 to vector<1x128xf32>
    %32 = arith.addf %30, %31 : vector<1x128xf32>
    %33 = math.rsqrt %32 : vector<1x128xf32>
    %34 = arith.mulf %18, %33 : vector<1x128xf32>
    %35 = arith.mulf %26, %34 : vector<1x128xf32>
    %36 = arith.subf %19, %35 : vector<1x128xf32>
    %37 = vector.broadcast %34 : vector<1x128xf32> to vector<32x128xf32>
    %38 = arith.mulf %17, %37 : vector<32x128xf32>
    %39 = vector.broadcast %36 : vector<1x128xf32> to vector<32x128xf32>
    %40 = arith.addf %38, %39 : vector<32x128xf32>
    %cst_30 = arith.constant 0.000000e+00 : f32
    %41 = vector.broadcast %cst_30 : f32 to vector<32x128xf32>
    %42 = arith.maximumf %40, %41 : vector<32x128xf32>
    %cst_31 = arith.constant dense<0.000000e+00> : vector<32x128xf32>
    %43 = tpu.matmul %0, %42, %cst_31 {dimension_numbers = #tpu.dot_dimension_numbers<[1], [0], [0], [1], [0, 0, 1, 1], [], []>} : vector<32x32xf32>, vector<32x128xf32>, vector<32x128xf32> -> vector<32x128xf32>
    %cst_32 = arith.constant dense<0.000000e+00> : vector<32x128xf32>
    %44 = tpu.matmul %1, %42, %cst_32 {dimension_numbers = #tpu.dot_dimension_numbers<[1], [0], [0], [1], [0, 0, 1, 1], [], []>} : vector<32x32xf32>, vector<32x128xf32>, vector<32x128xf32> -> vector<32x128xf32>
    %c0_33 = arith.constant 0 : index
    %c0_34 = arith.constant 0 : index
    %c0_35 = arith.constant 0 : index
    %45 = vector.load %arg4[%c0_33, %c0_34, %c0_35] : memref<3x128x128xf32, #tpu.memory_space<vmem>>, vector<1x128x128xf32>
    %46 = vector.shape_cast %45 : vector<1x128x128xf32> to vector<128x128xf32>
    %cst_36 = arith.constant dense<0.000000e+00> : vector<32x128xf32>
    %47 = tpu.matmul %43, %46, %cst_36 {dimension_numbers = #tpu.dot_dimension_numbers<[1], [0], [0], [1], [0, 0, 1, 1], [], []>} : vector<32x128xf32>, vector<128x128xf32>, vector<32x128xf32> -> vector<32x128xf32>
    %c1_37 = arith.constant 1 : index
    %c0_38 = arith.constant 0 : index
    %c0_39 = arith.constant 0 : index
    %48 = vector.load %arg4[%c1_37, %c0_38, %c0_39] : memref<3x128x128xf32, #tpu.memory_space<vmem>>, vector<1x128x128xf32>
    %49 = vector.shape_cast %48 : vector<1x128x128xf32> to vector<128x128xf32>
    %cst_40 = arith.constant dense<0.000000e+00> : vector<32x128xf32>
    %50 = tpu.matmul %42, %49, %cst_40 {dimension_numbers = #tpu.dot_dimension_numbers<[1], [0], [0], [1], [0, 0, 1, 1], [], []>} : vector<32x128xf32>, vector<128x128xf32>, vector<32x128xf32> -> vector<32x128xf32>
    %51 = arith.addf %47, %50 : vector<32x128xf32>
    %c2_41 = arith.constant 2 : index
    %c0_42 = arith.constant 0 : index
    %c0_43 = arith.constant 0 : index
    %52 = vector.load %arg4[%c2_41, %c0_42, %c0_43] : memref<3x128x128xf32, #tpu.memory_space<vmem>>, vector<1x128x128xf32>
    %53 = vector.shape_cast %52 : vector<1x128x128xf32> to vector<128x128xf32>
    %cst_44 = arith.constant dense<0.000000e+00> : vector<32x128xf32>
    %54 = tpu.matmul %44, %53, %cst_44 {dimension_numbers = #tpu.dot_dimension_numbers<[1], [0], [0], [1], [0, 0, 1, 1], [], []>} : vector<32x128xf32>, vector<128x128xf32>, vector<32x128xf32> -> vector<32x128xf32>
    %55 = arith.addf %51, %54 : vector<32x128xf32>
    %c0_45 = arith.constant 0 : index
    %c0_46 = arith.constant 0 : index
    %56 = vector.load %arg8[%c0_45, %c0_46] : memref<1x128xf32, #tpu.memory_space<vmem>>, vector<1x128xf32>
    %c0_47 = arith.constant 0 : index
    %c0_48 = arith.constant 0 : index
    %57 = vector.load %arg9[%c0_47, %c0_48] : memref<1x128xf32, #tpu.memory_space<vmem>>, vector<1x128xf32>
    %cst_49 = arith.constant dense<0.000000e+00> : vector<1x128xf32>
    %58 = tpu.matmul %3, %55, %cst_49 {dimension_numbers = #tpu.dot_dimension_numbers<[1], [0], [0], [1], [0, 0, 1, 1], [], []>} : vector<1x32xf32>, vector<32x128xf32>, vector<1x128xf32> -> vector<1x128xf32>
    %cst_50 = arith.constant dense<0.000000e+00> : vector<1x128xf32>
    %59 = tpu.matmul %58, %2, %cst_50 {dimension_numbers = #tpu.dot_dimension_numbers<[1], [0], [0], [1], [0, 0, 1, 1], [], []>} : vector<1x128xf32>, vector<128x128xf32>, vector<1x128xf32> -> vector<1x128xf32>
    %60 = arith.mulf %55, %55 : vector<32x128xf32>
    %cst_51 = arith.constant dense<0.000000e+00> : vector<1x128xf32>
    %61 = tpu.matmul %3, %60, %cst_51 {dimension_numbers = #tpu.dot_dimension_numbers<[1], [0], [0], [1], [0, 0, 1, 1], [], []>} : vector<1x32xf32>, vector<32x128xf32>, vector<1x128xf32> -> vector<1x128xf32>
    %cst_52 = arith.constant dense<0.000000e+00> : vector<1x128xf32>
    %62 = tpu.matmul %61, %2, %cst_52 {dimension_numbers = #tpu.dot_dimension_numbers<[1], [0], [0], [1], [0, 0, 1, 1], [], []>} : vector<1x128xf32>, vector<128x128xf32>, vector<1x128xf32> -> vector<1x128xf32>
    %cst_53 = arith.constant 0.001953125 : f32
    %63 = vector.broadcast %cst_53 : f32 to vector<1x128xf32>
    %64 = arith.mulf %59, %63 : vector<1x128xf32>
    %cst_54 = arith.constant 0.001953125 : f32
    %65 = vector.broadcast %cst_54 : f32 to vector<1x128xf32>
    %66 = arith.mulf %62, %65 : vector<1x128xf32>
    %67 = arith.mulf %64, %64 : vector<1x128xf32>
    %68 = arith.subf %66, %67 : vector<1x128xf32>
    %cst_55 = arith.constant 9.99999974E-6 : f32
    %69 = vector.broadcast %cst_55 : f32 to vector<1x128xf32>
    %70 = arith.addf %68, %69 : vector<1x128xf32>
    %71 = math.rsqrt %70 : vector<1x128xf32>
    %72 = arith.mulf %56, %71 : vector<1x128xf32>
    %73 = arith.mulf %64, %72 : vector<1x128xf32>
    %74 = arith.subf %57, %73 : vector<1x128xf32>
    %75 = vector.broadcast %72 : vector<1x128xf32> to vector<32x128xf32>
    %76 = arith.mulf %55, %75 : vector<32x128xf32>
    %77 = vector.broadcast %74 : vector<1x128xf32> to vector<32x128xf32>
    %78 = arith.addf %76, %77 : vector<32x128xf32>
    %cst_56 = arith.constant 0.000000e+00 : f32
    %79 = vector.broadcast %cst_56 : f32 to vector<32x128xf32>
    %80 = arith.maximumf %78, %79 : vector<32x128xf32>
    %c0_57 = arith.constant 0 : index
    %c0_58 = arith.constant 0 : index
    %81 = vector.load %arg10[%c0_57, %c0_58] : memref<32x128xf32, #tpu.memory_space<vmem>>, vector<32x128xf32>
    tpu.vector_store %arg10[%c0_57, %c0_58], %80 {strides = array<i32>} : memref<32x128xf32, #tpu.memory_space<vmem>>, vector<32x128xf32>,
    return
  }
}

</mosaic_0001>

<llo_original>
// kernel: tpu_custom_call.1
$region0: #{tpu_custom_call.1}
  #allocation0 [shape = 'u32[]', space=smem, size = 0x4, offset = 0x4, fixed_abs, tag = 'smem constant byte address 0x4 - core index']
  #allocation1 [shape = 'u32[144,128]{1,0:T(1,128)}', space=vmem, size = 0x12000, scoped, tag = 'internal scratch']
  %s0 = inlined_call_operand.hbm [shape: f32[32,64], index: 0, kind: input, shape index: {}]
  %s1 = inlined_call_operand.hbm [shape: f32[32,32], index: 1, kind: input, shape index: {}]
  %s2 = inlined_call_operand.hbm [shape: f32[32,32], index: 2, kind: input, shape index: {}]
  %s3 = inlined_call_operand.hbm [shape: f32[3,64,128], index: 3, kind: input, shape index: {}]
  %s4 = inlined_call_operand.hbm [shape: f32[3,128,128], index: 4, kind: input, shape index: {}]
  %s5 = inlined_call_operand.hbm [shape: f32[128,128], index: 5, kind: input, shape index: {}]
  %s6 = inlined_call_operand.vmem [shape: f32[1,128], index: 6, kind: input, shape index: {}]
  %s7 = inlined_call_operand.vmem [shape: f32[1,128], index: 7, kind: input, shape index: {}]
  %s8 = inlined_call_operand.vmem [shape: f32[1,128], index: 8, kind: input, shape index: {}]
  %s9 = inlined_call_operand.vmem [shape: f32[1,128], index: 9, kind: input, shape index: {}]
  %s10 = inlined_call_operand.hbm [shape: f32[32,128], index: 10, kind: output, shape index: {}]
  %s11 = sld [smem:[#allocation0]]
  $region74: #{tpu_custom_call.1} parent=0
    _
  %s13 = ssub.s32 1, %s11
  %s14 = scalar_select 0, %s13, %s11
  $region1: #{tpu_custom_call.1} parent=0
    #allocation2 [shape = 'u8[16384]{0}', space=vmem, size = 0x4000, scoped, tag = 'input window, operand 0, single buffered']
    #allocation3 [shape = 's32[1]{0}', space=sflag, size = 0x4, scoped, tag = 'scoped memory for tpu_custom_call.1']
    #allocation4 [shape = 's32[1]{0}', space=sflag, size = 0x4, scoped, tag = 'scoped memory for tpu_custom_call.1']
    #allocation5 [shape = 'u8[16384]{0}', space=vmem, size = 0x4000, scoped, tag = 'input window, operand 1, single buffered']
    #allocation6 [shape = 's32[1]{0}', space=sflag, size = 0x4, scoped, tag = 'scoped memory for tpu_custom_call.1']
    #allocation7 [shape = 'u8[16384]{0}', space=vmem, size = 0x4000, scoped, tag = 'input window, operand 2, single buffered']
    #allocation8 [shape = 'u8[98304]{0}', space=vmem, size = 0x18000, scoped, tag = 'input window, operand 3, single buffered']
    #allocation9 [shape = 's32[1]{0}', space=sflag, size = 0x4, scoped, tag = 'scoped memory for tpu_custom_call.1']
    #allocation10 [shape = 'u8[196608]{0}', space=vmem, size = 0x30000, scoped, tag = 'input window, operand 4, single buffered']
    #allocation11 [shape = 'u8[65536]{0}', space=vmem, size = 0x10000, scoped, tag = 'input window, operand 5, single buffered']
    #allocation12 [shape = 's32[1]{0}', space=sflag, size = 0x4, scoped, tag = 'scoped memory for tpu_custom_call.1']
    #allocation13 [shape = 'u8[16384]{0}', space=vmem, size = 0x4000, scoped, tag = 'output window, operand 0, single buffered']
    %15 = vsyncpa [#allocation3], 0
    %16 = vsyncpa [#allocation6], 0
    %17 = vsyncpa [#allocation9], 0
    %18 = vsyncpa [#allocation12], 0
    %19 = vsyncpa [#allocation4], 0
    // Predicated region
    $region2: #{tpu_custom_call.1} parent=1 // pred_check
      _
    $region3: #{tpu_custom_call.1} parent=1 // pred_check_branch
      %21 = sbr.rel (0) target = $region5
    $region4: #{tpu_custom_call.1} parent=1 // pred_region
      %s23 = ssub.s32 512, 512
      %24 = vsyncadd [#allocation3], %s23
      %s25 = sshll.u32 [#allocation2], 4
      %s26 = int_to_ptr.vmem [resolvable:$true] %s25
      %31 = dma.hbm_to_vmem [thread:$0]  %s0, 512, %s26, [#allocation3], 128, 128, 8
    $region5: #{tpu_custom_call.1} parent=1 // pred_fallthru
      _
    // Predicated region
    $region6: #{tpu_custom_call.1} parent=1 // pred_check
      _
    $region7: #{tpu_custom_call.1} parent=1 // pred_check_branch
      %33 = sbr.rel (0) target = $region9
    $region8: #{tpu_custom_call.1} parent=1 // pred_region
      %s35 = ssub.s32 512, 512
      %36 = vsyncadd [#allocation6], %s35
      %s37 = sshll.u32 [#allocation5], 4
      %s38 = int_to_ptr.vmem [resolvable:$true] %s37
      %43 = dma.hbm_to_vmem [thread:$0]  %s1, 512, %s38, [#allocation6], 128, 128, 8
    $region9: #{tpu_custom_call.1} parent=1 // pred_fallthru
      _
    // Predicated region
    $region10: #{tpu_custom_call.1} parent=1 // pred_check
      _
    $region11: #{tpu_custom_call.1} parent=1 // pred_check_branch
      %45 = sbr.rel (0) target = $region13
    $region12: #{tpu_custom_call.1} parent=1 // pred_region
      %s47 = ssub.s32 512, 512
      %48 = vsyncadd [#allocation6], %s47
      %s49 = sshll.u32 [#allocation7], 4
      %s50 = int_to_ptr.vmem [resolvable:$true] %s49
      %55 = dma.hbm_to_vmem [thread:$0]  %s2, 512, %s50, [#allocation6], 128, 128, 8
    $region13: #{tpu_custom_call.1} parent=1 // pred_fallthru
      _
    // Predicated region
    $region14: #{tpu_custom_call.1} parent=1 // pred_check
      _
    $region15: #{tpu_custom_call.1} parent=1 // pred_check_branch
      %57 = sbr.rel (0) target = $region17
    $region16: #{tpu_custom_call.1} parent=1 // pred_region
      %s59 = ssub.s32 3072, 3072
      %60 = vsyncadd [#allocation9], %s59
      %s61 = sshll.u32 [#allocation8], 4
      %s62 = int_to_ptr.vmem [resolvable:$true] %s61
      %67 = dma.hbm_to_vmem [thread:$0]  %s3, 3072, %s62, [#allocation9], 128, 128, 8
    $region17: #{tpu_custom_call.1} parent=1 // pred_fallthru
      _
    // Predicated region
    $region18: #{tpu_custom_call.1} parent=1 // pred_check
      _
    $region19: #{tpu_custom_call.1} parent=1 // pred_check_branch
      %69 = sbr.rel (0) target = $region21
    $region20: #{tpu_custom_call.1} parent=1 // pred_region
      %s71 = ssub.s32 6144, 6144
      %72 = vsyncadd [#allocation9], %s71
      %s73 = sshll.u32 [#allocation10], 4
      %s74 = int_to_ptr.vmem [resolvable:$true] %s73
      %79 = dma.hbm_to_vmem [thread:$0]  %s4, 6144, %s74, [#allocation9], 128, 128, 8
    $region21: #{tpu_custom_call.1} parent=1 // pred_fallthru
      _
    // Predicated region
    $region22: #{tpu_custom_call.1} parent=1 // pred_check
      _
    $region23: #{tpu_custom_call.1} parent=1 // pred_check_branch
      %81 = sbr.rel (0) target = $region25
    $region24: #{tpu_custom_call.1} parent=1 // pred_region
      %s83 = ssub.s32 2048, 2048
      %84 = vsyncadd [#allocation12], %s83
      %s85 = sshll.u32 [#allocation11], 4
      %s86 = int_to_ptr.vmem [resolvable:$true] %s85
      %91 = dma.hbm_to_vmem [thread:$0]  %s5, 2048, %s86, [#allocation12], 128, 128, 8
    $region25: #{tpu_custom_call.1} parent=1 // pred_fallthru
      _
    // Predicated region
    $region26: #{tpu_custom_call.1} parent=1 // pred_check
      _
    $region27: #{tpu_custom_call.1} parent=1 // pred_check_branch
      %93 = sbr.rel (0) target = $region29
    $region28: #{tpu_custom_call.1} parent=1 // pred_region
      _
    $region29: #{tpu_custom_call.1} parent=1 // pred_fallthru
      _
    // Predicated region
    $region30: #{tpu_custom_call.1} parent=1 // pred_check
      _
    $region31: #{tpu_custom_call.1} parent=1 // pred_check_branch
      %95 = sbr.rel (0) target = $region33
    $region32: #{tpu_custom_call.1} parent=1 // pred_region
      _
    $region33: #{tpu_custom_call.1} parent=1 // pred_fallthru
      _
    // Predicated region
    $region34: #{tpu_custom_call.1} parent=1 // pred_check
      _
    $region35: #{tpu_custom_call.1} parent=1 // pred_check_branch
      %97 = sbr.rel (0) target = $region37
    $region36: #{tpu_custom_call.1} parent=1 // pred_region
      _
    $region37: #{tpu_custom_call.1} parent=1 // pred_fallthru
      _
    // Predicated region
    $region38: #{tpu_custom_call.1} parent=1 // pred_check
      _
    $region39: #{tpu_custom_call.1} parent=1 // pred_check_branch
      %99 = sbr.rel (0) target = $region41
    $region40: #{tpu_custom_call.1} parent=1 // pred_region
      _
    $region41: #{tpu_custom_call.1} parent=1 // pred_fallthru
      _
    // Predicated region
    $region42: #{tpu_custom_call.1} parent=1 // pred_check
      _
    $region43: #{tpu_custom_call.1} parent=1 // pred_check_branch
      %101 = sbr.rel (0) target = $region45
    $region44: #{tpu_custom_call.1} parent=1 // pred_region
      %102 = dma.done [#allocation3], 512
    $region45: #{tpu_custom_call.1} parent=1 // pred_fallthru
      _
    // Predicated region
    $region46: #{tpu_custom_call.1} parent=1 // pred_check
      _
    $region47: #{tpu_custom_call.1} parent=1 // pred_check_branch
      %104 = sbr.rel (0) target = $region49
    $region48: #{tpu_custom_call.1} parent=1 // pred_region
      %105 = dma.done [#allocation6], 512
    $region49: #{tpu_custom_call.1} parent=1 // pred_fallthru
      _
    // Predicated region
    $region50: #{tpu_custom_call.1} parent=1 // pred_check
      _
    $region51: #{tpu_custom_call.1} parent=1 // pred_check_branch
      %107 = sbr.rel (0) target = $region53
    $region52: #{tpu_custom_call.1} parent=1 // pred_region
      %108 = dma.done [#allocation6], 512
    $region53: #{tpu_custom_call.1} parent=1 // pred_fallthru
      _
    // Predicated region
    $region54: #{tpu_custom_call.1} parent=1 // pred_check
      _
    $region55: #{tpu_custom_call.1} parent=1 // pred_check_branch
      %110 = sbr.rel (0) target = $region57
    $region56: #{tpu_custom_call.1} parent=1 // pred_region
      %111 = dma.done [#allocation9], 3072
    $region57: #{tpu_custom_call.1} parent=1 // pred_fallthru
      _
    // Predicated region
    $region58: #{tpu_custom_call.1} parent=1 // pred_check
      _
    $region59: #{tpu_custom_call.1} parent=1 // pred_check_branch
      %113 = sbr.rel (0) target = $region61
    $region60: #{tpu_custom_call.1} parent=1 // pred_region
      %114 = dma.done [#allocation9], 6144
    $region61: #{tpu_custom_call.1} parent=1 // pred_fallthru
      _
    // Predicated region
    $region62: #{tpu_custom_call.1} parent=1 // pred_check
      _
    $region63: #{tpu_custom_call.1} parent=1 // pred_check_branch
      %116 = sbr.rel (0) target = $region65
    $region64: #{tpu_custom_call.1} parent=1 // pred_region
      %117 = dma.done [#allocation12], 2048
    $region65: #{tpu_custom_call.1} parent=1 // pred_fallthru
      _
    %v118 = vld [vmem:[#allocation5] sm:$0xff]
    %v119 = vld [vmem:[#allocation5 + $0x8] sm:$0xff]
    %v120 = vld [vmem:[#allocation5 + $0x10] sm:$0xff]
    %v121 = vld [vmem:[#allocation5 + $0x18] sm:$0xff]
    %v122 = vld [vmem:[#allocation7] sm:$0xff]
    %v123 = vld [vmem:[#allocation7 + $0x8] sm:$0xff]
    %v124 = vld [vmem:[#allocation7 + $0x10] sm:$0xff]
    %v125 = vld [vmem:[#allocation7 + $0x18] sm:$0xff]
    %v126 = vld [vmem:[#allocation11] sm:$0xff]
    %v127 = vld [vmem:[#allocation11 + $0x8] sm:$0xff]
    %v128 = vld [vmem:[#allocation11 + $0x10] sm:$0xff]
    %v129 = vld [vmem:[#allocation11 + $0x18] sm:$0xff]
    %v130 = vld [vmem:[#allocation11 + $0x20] sm:$0xff]
    %v131 = vld [vmem:[#allocation11 + $0x28] sm:$0xff]
    %v132 = vld [vmem:[#allocation11 + $0x30] sm:$0xff]
    %v133 = vld [vmem:[#allocation11 + $0x38] sm:$0xff]
    %v134 = vld [vmem:[#allocation11 + $0x40] sm:$0xff]
    %v135 = vld [vmem:[#allocation11 + $0x48] sm:$0xff]
    %v136 = vld [vmem:[#allocation11 + $0x50] sm:$0xff]
    %v137 = vld [vmem:[#allocation11 + $0x58] sm:$0xff]
    %v138 = vld [vmem:[#allocation11 + $0x60] sm:$0xff]
    %v139 = vld [vmem:[#allocation11 + $0x68] sm:$0xff]
    %v140 = vld [vmem:[#allocation11 + $0x70] sm:$0xff]
    %v141 = vld [vmem:[#allocation11 + $0x78] sm:$0xff]
    %v142 = vld [vmem:[#allocation2] sm:$0xff]
    %v143 = vld [vmem:[#allocation2 + $0x8] sm:$0xff]
    %v144 = vld [vmem:[#allocation2 + $0x10] sm:$0xff]
    %v145 = vld [vmem:[#allocation2 + $0x18] sm:$0xff]
    %vm146 = vcmask 261120
    %v148 = vsel %vm146, %v118, 0
    %v151 = vsel %vm146, %v119, 0
    %v154 = vsel %vm146, %v120, 0
    %v157 = vsel %vm146, %v121, 0
    %159 = vmatprep.subr.mxu0 0.0
    %160 = vmatpush1.msra.mxu0 %v142
    %161 = vmatprep.subr.mxu0 0.0
    %162 = vmatpush1.msra.mxu0 %v143
    %163 = vmatprep.subr.mxu0 0.0
    %164 = vmatpush1.msra.mxu0 %v144
    %165 = vmatprep.subr.mxu0 0.0
    %166 = vmatpush1.msra.mxu0 %v145
    %167 = vmatprep.subr.mxu0 0.0
    %168 = vmatpush1.msra.mxu0 0.0
    %169 = vmatprep.subr.mxu0 0.0
    %170 = vmatpush1.msra.mxu0 0.0
    %171 = vmatprep.subr.mxu0 0.0
    %172 = vmatpush1.msra.mxu0 0.0
    %173 = vmatprep.subr.mxu0 0.0
    %174 = vmatpush1.msra.mxu0 0.0
    %175 = vmatprep.subr.mxu0 0.0
    %176 = vmatpush1.msra.mxu0 0.0
    %177 = vmatprep.subr.mxu0 0.0
    %178 = vmatpush1.msra.mxu0 0.0
    %179 = vmatprep.subr.mxu0 0.0
    %180 = vmatpush1.msra.mxu0 0.0
    %181 = vmatprep.subr.mxu0 0.0
    %182 = vmatpush1.msra.mxu0 0.0
    %183 = vmatprep.subr.mxu0 0.0
    %184 = vmatpush1.msra.mxu0 0.0
    %185 = vmatprep.subr.mxu0 0.0
    %186 = vmatpush1.msra.mxu0 0.0
    %187 = vmatprep.subr.mxu0 0.0
    %188 = vmatpush1.msra.mxu0 0.0
    %189 = vmatprep.subr.mxu0 0.0
    %190 = vmatpush1.msra.mxu0 0.0
    %191 = vmatprep.subr.mxu0 0.0
    %192 = vmatpush1.msra.mxu0 0.0
    %193 = vmatprep.subr.mxu0 0.0
    %194 = vmatpush1.msra.mxu0 0.0
    %195 = vmatprep.subr.mxu0 0.0
    %196 = vmatpush1.msra.mxu0 0.0
    %197 = vmatprep.subr.mxu0 0.0
    %198 = vmatpush1.msra.mxu0 0.0
    %199 = vmatprep.subr.mxu0 0.0
    %200 = vmatpush1.msra.mxu0 0.0
    %201 = vmatprep.subr.mxu0 0.0
    %202 = vmatpush1.msra.mxu0 0.0
    %203 = vmatprep.subr.mxu0 0.0
    %204 = vmatpush1.msra.mxu0 0.0
    %205 = vmatprep.subr.mxu0 0.0
    %206 = vmatpush1.msra.mxu0 0.0
    %207 = vmatprep.subr.mxu0 0.0
    %208 = vmatpush1.msra.mxu0 0.0
    %209 = vmatprep.subr.mxu0 0.0
    %210 = vmatpush1.msra.mxu0 0.0
    %211 = vmatprep.subr.mxu0 0.0
    %212 = vmatpush1.msra.mxu0 0.0
    %213 = vmatprep.subr.mxu0 0.0
    %214 = vmatpush1.msra.mxu0 0.0
    %215 = vmatprep.subr.mxu0 0.0
    %216 = vmatpush1.msra.mxu0 0.0
    %217 = vmatprep.subr.mxu0 0.0
    %218 = vmatpush1.msra.mxu0 0.0
    %219 = vmatprep.subr.mxu0 0.0
    %220 = vmatpush1.msra.mxu0 0.0
    %221 = vmatprep.subr.mxu0 0.0
    %222 = vmatpush1.msra.mxu0 0.0
    %223 = vmatprep.mubr.f32.mxu0 0.0
    %224 = vmatmul.mubr.f32.gmra.mrb[0].mxu0 %v148
    %v225 = vpop.f32.mrb[0].mxu0
    %v226 = vadd.f32 0.0, %v225
    %v227 = vpop.f32.mrb[0].mxu0
    %228 = vmatprep.mubr.f32.mxu0 0.0
    %229 = vmatmul.mubr.f32.gmra.mrb[0].mxu0 %v151
    %v230 = vpop.f32.mrb[0].mxu0
    %v231 = vadd.f32 0.0, %v230
    %v232 = vpop.f32.mrb[0].mxu0
    %233 = vmatprep.mubr.f32.mxu0 0.0
    %234 = vmatmul.mubr.f32.gmra.mrb[0].mxu0 %v154
    %v235 = vpop.f32.mrb[0].mxu0
    %v236 = vadd.f32 0.0, %v235
    %v237 = vpop.f32.mrb[0].mxu0
    %238 = vmatprep.mubr.f32.mxu0 0.0
    %239 = vmatmul.mubr.f32.gmra.mrb[0].mxu0 %v157
    %v240 = vpop.f32.mrb[0].mxu0
    %v241 = vadd.f32 0.0, %v240
    %v242 = vpop.f32.mrb[0].mxu0
    %243 = vdwg.mxu0
    %v245 = vsel %vm146, %v122, 0
    %v248 = vsel %vm146, %v123, 0
    %v251 = vsel %vm146, %v124, 0
    %v254 = vsel %vm146, %v125, 0
    %256 = vmatprep.subr.mxu0 0.0
    %257 = vmatpush1.msra.mxu0 %v142
    %258 = vmatprep.subr.mxu0 0.0
    %259 = vmatpush1.msra.mxu0 %v143
    %260 = vmatprep.subr.mxu0 0.0
    %261 = vmatpush1.msra.mxu0 %v144
    %262 = vmatprep.subr.mxu0 0.0
    %263 = vmatpush1.msra.mxu0 %v145
    %264 = vmatprep.subr.mxu0 0.0
    %265 = vmatpush1.msra.mxu0 0.0
    %266 = vmatprep.subr.mxu0 0.0
    %267 = vmatpush1.msra.mxu0 0.0
    %268 = vmatprep.subr.mxu0 0.0
    %269 = vmatpush1.msra.mxu0 0.0
    %270 = vmatprep.subr.mxu0 0.0
    %271 = vmatpush1.msra.mxu0 0.0
    %272 = vmatprep.subr.mxu0 0.0
    %273 = vmatpush1.msra.mxu0 0.0
    %274 = vmatprep.subr.mxu0 0.0
    %275 = vmatpush1.msra.mxu0 0.0
    %276 = vmatprep.subr.mxu0 0.0
    %277 = vmatpush1.msra.mxu0 0.0
    %278 = vmatprep.subr.mxu0 0.0
    %279 = vmatpush1.msra.mxu0 0.0
    %280 = vmatprep.subr.mxu0 0.0
    %281 = vmatpush1.msra.mxu0 0.0
    %282 = vmatprep.subr.mxu0 0.0
    %283 = vmatpush1.msra.mxu0 0.0
    %284 = vmatprep.subr.mxu0 0.0
    %285 = vmatpush1.msra.mxu0 0.0
    %286 = vmatprep.subr.mxu0 0.0
    %287 = vmatpush1.msra.mxu0 0.0
    %288 = vmatprep.subr.mxu0 0.0
    %289 = vmatpush1.msra.mxu0 0.0
    %290 = vmatprep.subr.mxu0 0.0
    %291 = vmatpush1.msra.mxu0 0.0
    %292 = vmatprep.subr.mxu0 0.0
    %293 = vmatpush1.msra.mxu0 0.0
    %294 = vmatprep.subr.mxu0 0.0
    %295 = vmatpush1.msra.mxu0 0.0
    %296 = vmatprep.subr.mxu0 0.0
    %297 = vmatpush1.msra.mxu0 0.0
    %298 = vmatprep.subr.mxu0 0.0
    %299 = vmatpush1.msra.mxu0 0.0
    %300 = vmatprep.subr.mxu0 0.0
    %301 = vmatpush1.msra.mxu0 0.0
    %302 = vmatprep.subr.mxu0 0.0
    %303 = vmatpush1.msra.mxu0 0.0
    %304 = vmatprep.subr.mxu0 0.0
    %305 = vmatpush1.msra.mxu0 0.0
    %306 = vmatprep.subr.mxu0 0.0
    %307 = vmatpush1.msra.mxu0 0.0
    %308 = vmatprep.subr.mxu0 0.0
    %309 = vmatpush1.msra.mxu0 0.0
    %310 = vmatprep.subr.mxu0 0.0
    %311 = vmatpush1.msra.mxu0 0.0
    %312 = vmatprep.subr.mxu0 0.0
    %313 = vmatpush1.msra.mxu0 0.0
    %314 = vmatprep.subr.mxu0 0.0
    %315 = vmatpush1.msra.mxu0 0.0
    %316 = vmatprep.subr.mxu0 0.0
    %317 = vmatpush1.msra.mxu0 0.0
    %318 = vmatprep.subr.mxu0 0.0
    %319 = vmatpush1.msra.mxu0 0.0
    %320 = vmatprep.mubr.f32.mxu0 0.0
    %321 = vmatmul.mubr.f32.gmra.mrb[0].mxu0 %v245
    %v322 = vpop.f32.mrb[0].mxu0
    %v323 = vadd.f32 0.0, %v322
    %v324 = vpop.f32.mrb[0].mxu0
    %325 = vmatprep.mubr.f32.mxu0 0.0
    %326 = vmatmul.mubr.f32.gmra.mrb[0].mxu0 %v248
    %v327 = vpop.f32.mrb[0].mxu0
    %v328 = vadd.f32 0.0, %v327
    %v329 = vpop.f32.mrb[0].mxu0
    %330 = vmatprep.mubr.f32.mxu0 0.0
    %331 = vmatmul.mubr.f32.gmra.mrb[0].mxu0 %v251
    %v332 = vpop.f32.mrb[0].mxu0
    %v333 = vadd.f32 0.0, %v332
    %v334 = vpop.f32.mrb[0].mxu0
    %335 = vmatprep.mubr.f32.mxu0 0.0
    %336 = vmatmul.mubr.f32.gmra.mrb[0].mxu0 %v254
    %v337 = vpop.f32.mrb[0].mxu0
    %v338 = vadd.f32 0.0, %v337
    %v339 = vpop.f32.mrb[0].mxu0
    %340 = vdwg.mxu0
    %v341 = vld [vmem:[#allocation8] sm:$0xff]
    %v342 = vld [vmem:[#allocation8 + $0x8] sm:$0xff]
    %v343 = vld [vmem:[#allocation8 + $0x10] sm:$0xff]
    %v344 = vld [vmem:[#allocation8 + $0x18] sm:$0xff]
    %v345 = vld [vmem:[#allocation8 + $0x20] sm:$0xff]
    %v346 = vld [vmem:[#allocation8 + $0x28] sm:$0xff]
    %v347 = vld [vmem:[#allocation8 + $0x30] sm:$0xff]
    %v348 = vld [vmem:[#allocation8 + $0x38] sm:$0xff]
    %s349 = scalar_lea.vmem [#allocation8], 64
    %v350 = vld [vmem:[%s349] sm:$0xff]
    %v351 = vld [vmem:[%s349 + $0x8] sm:$0xff]
    %v352 = vld [vmem:[%s349 + $0x10] sm:$0xff]
    %v353 = vld [vmem:[%s349 + $0x18] sm:$0xff]
    %v354 = vld [vmem:[%s349 + $0x20] sm:$0xff]
    %v355 = vld [vmem:[%s349 + $0x28] sm:$0xff]
    %v356 = vld [vmem:[%s349 + $0x30] sm:$0xff]
    %v357 = vld [vmem:[%s349 + $0x38] sm:$0xff]
    %vm358 = vcmask 523264
    %v360 = vsel %vm358, %v142, 0
    %v363 = vsel %vm358, %v143, 0
    %v366 = vsel %vm358, %v144, 0
    %v369 = vsel %vm358, %v145, 0
    %371 = vmatprep.subr.mxu0 0.0
    %372 = vmatpush1.msra.mxu0 %v350
    %373 = vmatprep.subr.mxu0 0.0
    %374 = vmatpush1.msra.mxu0 %v351
    %375 = vmatprep.subr.mxu0 0.0
    %376 = vmatpush1.msra.mxu0 %v352
    %377 = vmatprep.subr.mxu0 0.0
    %378 = vmatpush1.msra.mxu0 %v353
    %379 = vmatprep.subr.mxu0 0.0
    %380 = vmatpush1.msra.mxu0 %v354
    %381 = vmatprep.subr.mxu0 0.0
    %382 = vmatpush1.msra.mxu0 %v355
    %383 = vmatprep.subr.mxu0 0.0
    %384 = vmatpush1.msra.mxu0 %v356
    %385 = vmatprep.subr.mxu0 0.0
    %386 = vmatpush1.msra.mxu0 %v357
    %387 = vmatprep.subr.mxu0 0.0
    %388 = vmatpush1.msra.mxu0 0.0
    %389 = vmatprep.subr.mxu0 0.0
    %390 = vmatpush1.msra.mxu0 0.0
    %391 = vmatprep.subr.mxu0 0.0
    %392 = vmatpush1.msra.mxu0 0.0
    %393 = vmatprep.subr.mxu0 0.0
    %394 = vmatpush1.msra.mxu0 0.0
    %395 = vmatprep.subr.mxu0 0.0
    %396 = vmatpush1.msra.mxu0 0.0
    %397 = vmatprep.subr.mxu0 0.0
    %398 = vmatpush1.msra.mxu0 0.0
    %399 = vmatprep.subr.mxu0 0.0
    %400 = vmatpush1.msra.mxu0 0.0
    %401 = vmatprep.subr.mxu0 0.0
    %402 = vmatpush1.msra.mxu0 0.0
    %403 = vmatprep.subr.mxu0 0.0
    %404 = vmatpush1.msra.mxu0 0.0
    %405 = vmatprep.subr.mxu0 0.0
    %406 = vmatpush1.msra.mxu0 0.0
    %407 = vmatprep.subr.mxu0 0.0
    %408 = vmatpush1.msra.mxu0 0.0
    %409 = vmatprep.subr.mxu0 0.0
    %410 = vmatpush1.msra.mxu0 0.0
    %411 = vmatprep.subr.mxu0 0.0
    %412 = vmatpush1.msra.mxu0 0.0
    %413 = vmatprep.subr.mxu0 0.0
    %414 = vmatpush1.msra.mxu0 0.0
    %415 = vmatprep.subr.mxu0 0.0
    %416 = vmatpush1.msra.mxu0 0.0
    %417 = vmatprep.subr.mxu0 0.0
    %418 = vmatpush1.msra.mxu0 0.0
    %419 = vmatprep.subr.mxu0 0.0
    %420 = vmatpush1.msra.mxu0 0.0
    %421 = vmatprep.subr.mxu0 0.0
    %422 = vmatpush1.msra.mxu0 0.0
    %423 = vmatprep.subr.mxu0 0.0
    %424 = vmatpush1.msra.mxu0 0.0
    %425 = vmatprep.subr.mxu0 0.0
    %426 = vmatpush1.msra.mxu0 0.0
    %427 = vmatprep.subr.mxu0 0.0
    %428 = vmatpush1.msra.mxu0 0.0
    %429 = vmatprep.subr.mxu0 0.0
    %430 = vmatpush1.msra.mxu0 0.0
    %431 = vmatprep.subr.mxu0 0.0
    %432 = vmatpush1.msra.mxu0 0.0
    %433 = vmatprep.subr.mxu0 0.0
    %434 = vmatpush1.msra.mxu0 0.0
    %435 = vmatprep.mubr.f32.mxu0 0.0
    %436 = vmatmul.mubr.f32.gmra.mrb[0].mxu0 %v360
    %v437 = vpop.f32.mrb[0].mxu0
    %v438 = vadd.f32 0.0, %v437
    %v439 = vpop.f32.mrb[0].mxu0
    %440 = vmatprep.mubr.f32.mxu0 0.0
    %441 = vmatmul.mubr.f32.gmra.mrb[0].mxu0 %v363
    %v442 = vpop.f32.mrb[0].mxu0
    %v443 = vadd.f32 0.0, %v442
    %v444 = vpop.f32.mrb[0].mxu0
    %445 = vmatprep.mubr.f32.mxu0 0.0
    %446 = vmatmul.mubr.f32.gmra.mrb[0].mxu0 %v366
    %v447 = vpop.f32.mrb[0].mxu0
    %v448 = vadd.f32 0.0, %v447
    %v449 = vpop.f32.mrb[0].mxu0
    %450 = vmatprep.mubr.f32.mxu0 0.0
    %451 = vmatmul.mubr.f32.gmra.mrb[0].mxu0 %v369
    %v452 = vpop.f32.mrb[0].mxu0
    %v453 = vadd.f32 0.0, %v452
    %v454 = vpop.f32.mrb[0].mxu0
    %455 = vdwg.mxu0
    %v457 = vsel %vm358, %v226, 0
    %v460 = vsel %vm358, %v231, 0
    %v463 = vsel %vm358, %v236, 0
    %v466 = vsel %vm358, %v241, 0
    %468 = vmatprep.subr.mxu0 0.0
    %469 = vmatpush1.msra.mxu0 %v341
    %470 = vmatprep.subr.mxu0 0.0
    %471 = vmatpush1.msra.mxu0 %v342
    %472 = vmatprep.subr.mxu0 0.0
    %473 = vmatpush1.msra.mxu0 %v343
    %474 = vmatprep.subr.mxu0 0.0
    %475 = vmatpush1.msra.mxu0 %v344
    %476 = vmatprep.subr.mxu0 0.0
    %477 = vmatpush1.msra.mxu0 %v345
    %478 = vmatprep.subr.mxu0 0.0
    %479 = vmatpush1.msra.mxu0 %v346
    %480 = vmatprep.subr.mxu0 0.0
    %481 = vmatpush1.msra.mxu0 %v347
    %482 = vmatprep.subr.mxu0 0.0
    %483 = vmatpush1.msra.mxu0 %v348
    %484 = vmatprep.subr.mxu0 0.0
    %485 = vmatpush1.msra.mxu0 0.0
    %486 = vmatprep.subr.mxu0 0.0
    %487 = vmatpush1.msra.mxu0 0.0
    %488 = vmatprep.subr.mxu0 0.0
    %489 = vmatpush1.msra.mxu0 0.0
    %490 = vmatprep.subr.mxu0 0.0
    %491 = vmatpush1.msra.mxu0 0.0
    %492 = vmatprep.subr.mxu0 0.0
    %493 = vmatpush1.msra.mxu0 0.0
    %494 = vmatprep.subr.mxu0 0.0
    %495 = vmatpush1.msra.mxu0 0.0
    %496 = vmatprep.subr.mxu0 0.0
    %497 = vmatpush1.msra.mxu0 0.0
    %498 = vmatprep.subr.mxu0 0.0
    %499 = vmatpush1.msra.mxu0 0.0
    %500 = vmatprep.subr.mxu0 0.0
    %501 = vmatpush1.msra.mxu0 0.0
    %502 = vmatprep.subr.mxu0 0.0
    %503 = vmatpush1.msra.mxu0 0.0
    %504 = vmatprep.subr.mxu0 0.0
    %505 = vmatpush1.msra.mxu0 0.0
    %506 = vmatprep.subr.mxu0 0.0
    %507 = vmatpush1.msra.mxu0 0.0
    %508 = vmatprep.subr.mxu0 0.0
    %509 = vmatpush1.msra.mxu0 0.0
    %510 = vmatprep.subr.mxu0 0.0
    %511 = vmatpush1.msra.mxu0 0.0
    %512 = vmatprep.subr.mxu0 0.0
    %513 = vmatpush1.msra.mxu0 0.0
    %514 = vmatprep.subr.mxu0 0.0
    %515 = vmatpush1.msra.mxu0 0.0
    %516 = vmatprep.subr.mxu0 0.0
    %517 = vmatpush1.msra.mxu0 0.0
    %518 = vmatprep.subr.mxu0 0.0
    %519 = vmatpush1.msra.mxu0 0.0
    %520 = vmatprep.subr.mxu0 0.0
    %521 = vmatpush1.msra.mxu0 0.0
    %522 = vmatprep.subr.mxu0 0.0
    %523 = vmatpush1.msra.mxu0 0.0
    %524 = vmatprep.subr.mxu0 0.0
    %525 = vmatpush1.msra.mxu0 0.0
    %526 = vmatprep.subr.mxu0 0.0
    %527 = vmatpush1.msra.mxu0 0.0
    %528 = vmatprep.subr.mxu0 0.0
    %529 = vmatpush1.msra.mxu0 0.0
    %530 = vmatprep.subr.mxu0 0.0
    %531 = vmatpush1.msra.mxu0 0.0
    %532 = vmatprep.mubr.f32.mxu0 0.0
    %533 = vmatmul.mubr.f32.gmra.mrb[0].mxu0 %v457
    %v534 = vpop.f32.mrb[0].mxu0
    %v535 = vadd.f32 %v438, %v534
    %v536 = vpop.f32.mrb[0].mxu0
    %537 = vmatprep.mubr.f32.mxu0 0.0
    %538 = vmatmul.mubr.f32.gmra.mrb[0].mxu0 %v460
    %v539 = vpop.f32.mrb[0].mxu0
    %v540 = vadd.f32 %v443, %v539
    %v541 = vpop.f32.mrb[0].mxu0
    %542 = vmatprep.mubr.f32.mxu0 0.0
    %543 = vmatmul.mubr.f32.gmra.mrb[0].mxu0 %v463
    %v544 = vpop.f32.mrb[0].mxu0
    %v545 = vadd.f32 %v448, %v544
    %v546 = vpop.f32.mrb[0].mxu0
    %547 = vmatprep.mubr.f32.mxu0 0.0
    %548 = vmatmul.mubr.f32.gmra.mrb[0].mxu0 %v466
    %v549 = vpop.f32.mrb[0].mxu0
    %v550 = vadd.f32 %v453, %v549
    %v551 = vpop.f32.mrb[0].mxu0
    %552 = vdwg.mxu0
    %s553 = scalar_lea.vmem [#allocation8], 128
    %v554 = vld [vmem:[%s553] sm:$0xff]
    %v555 = vld [vmem:[%s553 + $0x8] sm:$0xff]
    %v556 = vld [vmem:[%s553 + $0x10] sm:$0xff]
    %v557 = vld [vmem:[%s553 + $0x18] sm:$0xff]
    %v558 = vld [vmem:[%s553 + $0x20] sm:$0xff]
    %v559 = vld [vmem:[%s553 + $0x28] sm:$0xff]
    %v560 = vld [vmem:[%s553 + $0x30] sm:$0xff]
    %v561 = vld [vmem:[%s553 + $0x38] sm:$0xff]
    %v563 = vsel %vm358, %v323, 0
    %v566 = vsel %vm358, %v328, 0
    %v569 = vsel %vm358, %v333, 0
    %v572 = vsel %vm358, %v338, 0
    %574 = vmatprep.subr.mxu0 0.0
    %575 = vmatpush1.msra.mxu0 %v554
    %576 = vmatprep.subr.mxu0 0.0
    %577 = vmatpush1.msra.mxu0 %v555
    %578 = vmatprep.subr.mxu0 0.0
    %579 = vmatpush1.msra.mxu0 %v556
    %580 = vmatprep.subr.mxu0 0.0
    %581 = vmatpush1.msra.mxu0 %v557
    %582 = vmatprep.subr.mxu0 0.0
    %583 = vmatpush1.msra.mxu0 %v558
    %584 = vmatprep.subr.mxu0 0.0
    %585 = vmatpush1.msra.mxu0 %v559
    %586 = vmatprep.subr.mxu0 0.0
    %587 = vmatpush1.msra.mxu0 %v560
    %588 = vmatprep.subr.mxu0 0.0
    %589 = vmatpush1.msra.mxu0 %v561
    %590 = vmatprep.subr.mxu0 0.0
    %591 = vmatpush1.msra.mxu0 0.0
    %592 = vmatprep.subr.mxu0 0.0
    %593 = vmatpush1.msra.mxu0 0.0
    %594 = vmatprep.subr.mxu0 0.0
    %595 = vmatpush1.msra.mxu0 0.0
    %596 = vmatprep.subr.mxu0 0.0
    %597 = vmatpush1.msra.mxu0 0.0
    %598 = vmatprep.subr.mxu0 0.0
    %599 = vmatpush1.msra.mxu0 0.0
    %600 = vmatprep.subr.mxu0 0.0
    %601 = vmatpush1.msra.mxu0 0.0
    %602 = vmatprep.subr.mxu0 0.0
    %603 = vmatpush1.msra.mxu0 0.0
    %604 = vmatprep.subr.mxu0 0.0
    %605 = vmatpush1.msra.mxu0 0.0
    %606 = vmatprep.subr.mxu0 0.0
    %607 = vmatpush1.msra.mxu0 0.0
    %608 = vmatprep.subr.mxu0 0.0
    %609 = vmatpush1.msra.mxu0 0.0
    %610 = vmatprep.subr.mxu0 0.0
    %611 = vmatpush1.msra.mxu0 0.0
    %612 = vmatprep.subr.mxu0 0.0
    %613 = vmatpush1.msra.mxu0 0.0
    %614 = vmatprep.subr.mxu0 0.0
    %615 = vmatpush1.msra.mxu0 0.0
    %616 = vmatprep.subr.mxu0 0.0
    %617 = vmatpush1.msra.mxu0 0.0
    %618 = vmatprep.subr.mxu0 0.0
    %619 = vmatpush1.msra.mxu0 0.0
    %620 = vmatprep.subr.mxu0 0.0
    %621 = vmatpush1.msra.mxu0 0.0
    %622 = vmatprep.subr.mxu0 0.0
    %623 = vmatpush1.msra.mxu0 0.0
    %624 = vmatprep.subr.mxu0 0.0
    %625 = vmatpush1.msra.mxu0 0.0
    %626 = vmatprep.subr.mxu0 0.0
    %627 = vmatpush1.msra.mxu0 0.0
    %628 = vmatprep.subr.mxu0 0.0
    %629 = vmatpush1.msra.mxu0 0.0
    %630 = vmatprep.subr.mxu0 0.0
    %631 = vmatpush1.msra.mxu0 0.0
    %632 = vmatprep.subr.mxu0 0.0
    %633 = vmatpush1.msra.mxu0 0.0
    %634 = vmatprep.subr.mxu0 0.0
    %635 = vmatpush1.msra.mxu0 0.0
    %636 = vmatprep.subr.mxu0 0.0
    %637 = vmatpush1.msra.mxu0 0.0
    %638 = vmatprep.mubr.f32.mxu0 0.0
    %639 = vmatmul.mubr.f32.gmra.mrb[0].mxu0 %v563
    %v640 = vpop.f32.mrb[0].mxu0
    %v641 = vadd.f32 0.0, %v640
    %v642 = vpop.f32.mrb[0].mxu0
    %643 = vmatprep.mubr.f32.mxu0 0.0
    %644 = vmatmul.mubr.f32.gmra.mrb[0].mxu0 %v566
    %v645 = vpop.f32.mrb[0].mxu0
    %v646 = vadd.f32 0.0, %v645
    %v647 = vpop.f32.mrb[0].mxu0
    %648 = vmatprep.mubr.f32.mxu0 0.0
    %649 = vmatmul.mubr.f32.gmra.mrb[0].mxu0 %v569
    %v650 = vpop.f32.mrb[0].mxu0
    %v651 = vadd.f32 0.0, %v650
    %v652 = vpop.f32.mrb[0].mxu0
    %653 = vmatprep.mubr.f32.mxu0 0.0
    %654 = vmatmul.mubr.f32.gmra.mrb[0].mxu0 %v572
    %v655 = vpop.f32.mrb[0].mxu0
    %v656 = vadd.f32 0.0, %v655
    %v657 = vpop.f32.mrb[0].mxu0
    %658 = vdwg.mxu0
    %v659 = vadd.f32 %v535, %v641
    %v660 = vadd.f32 %v540, %v646
    %v661 = vadd.f32 %v545, %v651
    %v662 = vadd.f32 %v550, %v656
    %v663 = vld [vmem:[%s6] sm:$0x1]
    %v664 = vld [vmem:[%s7] sm:$0x1]
    %v666 = vsel %vm146, 1.0, 0
    %668 = vmatprep.subr.mxu0 0.0
    %669 = vmatpush1.msra.mxu0 %v659
    %670 = vmatprep.subr.mxu0 0.0
    %671 = vmatpush1.msra.mxu0 %v660
    %672 = vmatprep.subr.mxu0 0.0
    %673 = vmatpush1.msra.mxu0 %v661
    %674 = vmatprep.subr.mxu0 0.0
    %675 = vmatpush1.msra.mxu0 %v662
    %676 = vmatprep.subr.mxu0 0.0
    %677 = vmatpush1.msra.mxu0 0.0
    %678 = vmatprep.subr.mxu0 0.0
    %679 = vmatpush1.msra.mxu0 0.0
    %680 = vmatprep.subr.mxu0 0.0
    %681 = vmatpush1.msra.mxu0 0.0
    %682 = vmatprep.subr.mxu0 0.0
    %683 = vmatpush1.msra.mxu0 0.0
    %684 = vmatprep.subr.mxu0 0.0
    %685 = vmatpush1.msra.mxu0 0.0
    %686 = vmatprep.subr.mxu0 0.0
    %687 = vmatpush1.msra.mxu0 0.0
    %688 = vmatprep.subr.mxu0 0.0
    %689 = vmatpush1.msra.mxu0 0.0
    %690 = vmatprep.subr.mxu0 0.0
    %691 = vmatpush1.msra.mxu0 0.0
    %692 = vmatprep.subr.mxu0 0.0
    %693 = vmatpush1.msra.mxu0 0.0
    %694 = vmatprep.subr.mxu0 0.0
    %695 = vmatpush1.msra.mxu0 0.0
    %696 = vmatprep.subr.mxu0 0.0
    %697 = vmatpush1.msra.mxu0 0.0
    %698 = vmatprep.subr.mxu0 0.0
    %699 = vmatpush1.msra.mxu0 0.0
    %700 = vmatprep.subr.mxu0 0.0
    %701 = vmatpush1.msra.mxu0 0.0
    %702 = vmatprep.subr.mxu0 0.0
    %703 = vmatpush1.msra.mxu0 0.0
    %704 = vmatprep.subr.mxu0 0.0
    %705 = vmatpush1.msra.mxu0 0.0
    %706 = vmatprep.subr.mxu0 0.0
    %707 = vmatpush1.msra.mxu0 0.0
    %708 = vmatprep.subr.mxu0 0.0
    %709 = vmatpush1.msra.mxu0 0.0
    %710 = vmatprep.subr.mxu0 0.0
    %711 = vmatpush1.msra.mxu0 0.0
    %712 = vmatprep.subr.mxu0 0.0
    %713 = vmatpush1.msra.mxu0 0.0
    %714 = vmatprep.subr.mxu0 0.0
    %715 = vmatpush1.msra.mxu0 0.0
    %716 = vmatprep.subr.mxu0 0.0
    %717 = vmatpush1.msra.mxu0 0.0
    %718 = vmatprep.subr.mxu0 0.0
    %719 = vmatpush1.msra.mxu0 0.0
    %720 = vmatprep.subr.mxu0 0.0
    %721 = vmatpush1.msra.mxu0 0.0
    %722 = vmatprep.subr.mxu0 0.0
    %723 = vmatpush1.msra.mxu0 0.0
    %724 = vmatprep.subr.mxu0 0.0
    %725 = vmatpush1.msra.mxu0 0.0
    %726 = vmatprep.subr.mxu0 0.0
    %727 = vmatpush1.msra.mxu0 0.0
    %728 = vmatprep.subr.mxu0 0.0
    %729 = vmatpush1.msra.mxu0 0.0
    %730 = vmatprep.subr.mxu0 0.0
    %731 = vmatpush1.msra.mxu0 0.0
    %732 = vmatprep.mubr.f32.mxu0 0.0
    %733 = vmatmul.mubr.f32.gmra.mrb[0].mxu0 %v666
    %v734 = vpop.f32.mrb[0].mxu0
    %v735 = vadd.f32 0.0, %v734
    %v736 = vpop.f32.mrb[0].mxu0
    %737 = vdwg.mxu0
    %738 = vmatprep.subr.mxu0 0.0
    %739 = vmatpush1.msra.mxu0 %v126
    %740 = vmatprep.subr.mxu0 0.0
    %741 = vmatpush1.msra.mxu0 %v127
    %742 = vmatprep.subr.mxu0 0.0
    %743 = vmatpush1.msra.mxu0 %v128
    %744 = vmatprep.subr.mxu0 0.0
    %745 = vmatpush1.msra.mxu0 %v129
    %746 = vmatprep.subr.mxu0 0.0
    %747 = vmatpush1.msra.mxu0 %v130
    %748 = vmatprep.subr.mxu0 0.0
    %749 = vmatpush1.msra.mxu0 %v131
    %750 = vmatprep.subr.mxu0 0.0
    %751 = vmatpush1.msra.mxu0 %v132
    %752 = vmatprep.subr.mxu0 0.0
    %753 = vmatpush1.msra.mxu0 %v133
    %754 = vmatprep.subr.mxu0 0.0
    %755 = vmatpush1.msra.mxu0 %v134
    %756 = vmatprep.subr.mxu0 0.0
    %757 = vmatpush1.msra.mxu0 %v135
    %758 = vmatprep.subr.mxu0 0.0
    %759 = vmatpush1.msra.mxu0 %v136
    %760 = vmatprep.subr.mxu0 0.0
    %761 = vmatpush1.msra.mxu0 %v137
    %762 = vmatprep.subr.mxu0 0.0
    %763 = vmatpush1.msra.mxu0 %v138
    %764 = vmatprep.subr.mxu0 0.0
    %765 = vmatpush1.msra.mxu0 %v139
    %766 = vmatprep.subr.mxu0 0.0
    %767 = vmatpush1.msra.mxu0 %v140
    %768 = vmatprep.subr.mxu0 0.0
    %769 = vmatpush1.msra.mxu0 %v141
    %770 = vmatprep.subr.mxu0 0.0
    %771 = vmatpush1.msra.mxu0 0.0
    %772 = vmatprep.subr.mxu0 0.0
    %773 = vmatpush1.msra.mxu0 0.0
    %774 = vmatprep.subr.mxu0 0.0
    %775 = vmatpush1.msra.mxu0 0.0
    %776 = vmatprep.subr.mxu0 0.0
    %777 = vmatpush1.msra.mxu0 0.0
    %778 = vmatprep.subr.mxu0 0.0
    %779 = vmatpush1.msra.mxu0 0.0
    %780 = vmatprep.subr.mxu0 0.0
    %781 = vmatpush1.msra.mxu0 0.0
    %782 = vmatprep.subr.mxu0 0.0
    %783 = vmatpush1.msra.mxu0 0.0
    %784 = vmatprep.subr.mxu0 0.0
    %785 = vmatpush1.msra.mxu0 0.0
    %786 = vmatprep.subr.mxu0 0.0
    %787 = vmatpush1.msra.mxu0 0.0
    %788 = vmatprep.subr.mxu0 0.0
    %789 = vmatpush1.msra.mxu0 0.0
    %790 = vmatprep.subr.mxu0 0.0
    %791 = vmatpush1.msra.mxu0 0.0
    %792 = vmatprep.subr.mxu0 0.0
    %793 = vmatpush1.msra.mxu0 0.0
    %794 = vmatprep.subr.mxu0 0.0
    %795 = vmatpush1.msra.mxu0 0.0
    %796 = vmatprep.subr.mxu0 0.0
    %797 = vmatpush1.msra.mxu0 0.0
    %798 = vmatprep.subr.mxu0 0.0
    %799 = vmatpush1.msra.mxu0 0.0
    %800 = vmatprep.subr.mxu0 0.0
    %801 = vmatpush1.msra.mxu0 0.0
    %802 = vmatprep.mubr.f32.mxu0 0.0
    %803 = vmatmul.mubr.f32.gmra.mrb[0].mxu0 %v735
    %v804 = vpop.f32.mrb[0].mxu0
    %v805 = vadd.f32 0.0, %v804
    %v806 = vpop.f32.mrb[0].mxu0
    %807 = vdwg.mxu0
    %v808 = vmul.f32 %v659, %v659
    %v809 = vmul.f32 %v660, %v660
    %v810 = vmul.f32 %v661, %v661
    %v811 = vmul.f32 %v662, %v662
    %812 = vmatprep.subr.mxu0 0.0
    %813 = vmatpush1.msra.mxu0 %v808
    %814 = vmatprep.subr.mxu0 0.0
    %815 = vmatpush1.msra.mxu0 %v809
    %816 = vmatprep.subr.mxu0 0.0
    %817 = vmatpush1.msra.mxu0 %v810
    %818 = vmatprep.subr.mxu0 0.0
    %819 = vmatpush1.msra.mxu0 %v811
    %820 = vmatprep.subr.mxu0 0.0
    %821 = vmatpush1.msra.mxu0 0.0
    %822 = vmatprep.subr.mxu0 0.0
    %823 = vmatpush1.msra.mxu0 0.0
    %824 = vmatprep.subr.mxu0 0.0
    %825 = vmatpush1.msra.mxu0 0.0
    %826 = vmatprep.subr.mxu0 0.0
    %827 = vmatpush1.msra.mxu0 0.0
    %828 = vmatprep.subr.mxu0 0.0
    %829 = vmatpush1.msra.mxu0 0.0
    %830 = vmatprep.subr.mxu0 0.0
    %831 = vmatpush1.msra.mxu0 0.0
    %832 = vmatprep.subr.mxu0 0.0
    %833 = vmatpush1.msra.mxu0 0.0
    %834 = vmatprep.subr.mxu0 0.0
    %835 = vmatpush1.msra.mxu0 0.0
    %836 = vmatprep.subr.mxu0 0.0
    %837 = vmatpush1.msra.mxu0 0.0
    %838 = vmatprep.subr.mxu0 0.0
    %839 = vmatpush1.msra.mxu0 0.0
    %840 = vmatprep.subr.mxu0 0.0
    %841 = vmatpush1.msra.mxu0 0.0
    %842 = vmatprep.subr.mxu0 0.0
    %843 = vmatpush1.msra.mxu0 0.0
    %844 = vmatprep.subr.mxu0 0.0
    %845 = vmatpush1.msra.mxu0 0.0
    %846 = vmatprep.subr.mxu0 0.0
    %847 = vmatpush1.msra.mxu0 0.0
    %848 = vmatprep.subr.mxu0 0.0
    %849 = vmatpush1.msra.mxu0 0.0
    %850 = vmatprep.subr.mxu0 0.0
    %851 = vmatpush1.msra.mxu0 0.0
    %852 = vmatprep.subr.mxu0 0.0
    %853 = vmatpush1.msra.mxu0 0.0
    %854 = vmatprep.subr.mxu0 0.0
    %855 = vmatpush1.msra.mxu0 0.0
    %856 = vmatprep.subr.mxu0 0.0
    %857 = vmatpush1.msra.mxu0 0.0
    %858 = vmatprep.subr.mxu0 0.0
    %859 = vmatpush1.msra.mxu0 0.0
    %860 = vmatprep.subr.mxu0 0.0
    %861 = vmatpush1.msra.mxu0 0.0
    %862 = vmatprep.subr.mxu0 0.0
    %863 = vmatpush1.msra.mxu0 0.0
    %864 = vmatprep.subr.mxu0 0.0
    %865 = vmatpush1.msra.mxu0 0.0
    %866 = vmatprep.subr.mxu0 0.0
    %867 = vmatpush1.msra.mxu0 0.0
    %868 = vmatprep.subr.mxu0 0.0
    %869 = vmatpush1.msra.mxu0 0.0
    %870 = vmatprep.subr.mxu0 0.0
    %871 = vmatpush1.msra.mxu0 0.0
    %872 = vmatprep.subr.mxu0 0.0
    %873 = vmatpush1.msra.mxu0 0.0
    %874 = vmatprep.subr.mxu0 0.0
    %875 = vmatpush1.msra.mxu0 0.0
    %876 = vmatprep.mubr.f32.mxu0 0.0
    %877 = vmatmul.mubr.f32.gmra.mrb[0].mxu0 %v666
    %v878 = vpop.f32.mrb[0].mxu0
    %v879 = vadd.f32 0.0, %v878
    %v880 = vpop.f32.mrb[0].mxu0
    %881 = vdwg.mxu0
    %882 = vmatprep.subr.mxu0 0.0
    %883 = vmatpush1.msra.mxu0 %v126
    %884 = vmatprep.subr.mxu0 0.0
    %885 = vmatpush1.msra.mxu0 %v127
    %886 = vmatprep.subr.mxu0 0.0
    %887 = vmatpush1.msra.mxu0 %v128
    %888 = vmatprep.subr.mxu0 0.0
    %889 = vmatpush1.msra.mxu0 %v129
    %890 = vmatprep.subr.mxu0 0.0
    %891 = vmatpush1.msra.mxu0 %v130
    %892 = vmatprep.subr.mxu0 0.0
    %893 = vmatpush1.msra.mxu0 %v131
    %894 = vmatprep.subr.mxu0 0.0
    %895 = vmatpush1.msra.mxu0 %v132
    %896 = vmatprep.subr.mxu0 0.0
    %897 = vmatpush1.msra.mxu0 %v133
    %898 = vmatprep.subr.mxu0 0.0
    %899 = vmatpush1.msra.mxu0 %v134
    %900 = vmatprep.subr.mxu0 0.0
    %901 = vmatpush1.msra.mxu0 %v135
    %902 = vmatprep.subr.mxu0 0.0
    %903 = vmatpush1.msra.mxu0 %v136
    %904 = vmatprep.subr.mxu0 0.0
    %905 = vmatpush1.msra.mxu0 %v137
    %906 = vmatprep.subr.mxu0 0.0
    %907 = vmatpush1.msra.mxu0 %v138
    %908 = vmatprep.subr.mxu0 0.0
    %909 = vmatpush1.msra.mxu0 %v139
    %910 = vmatprep.subr.mxu0 0.0
    %911 = vmatpush1.msra.mxu0 %v140
    %912 = vmatprep.subr.mxu0 0.0
    %913 = vmatpush1.msra.mxu0 %v141
    %914 = vmatprep.subr.mxu0 0.0
    %915 = vmatpush1.msra.mxu0 0.0
    %916 = vmatprep.subr.mxu0 0.0
    %917 = vmatpush1.msra.mxu0 0.0
    %918 = vmatprep.subr.mxu0 0.0
    %919 = vmatpush1.msra.mxu0 0.0
    %920 = vmatprep.subr.mxu0 0.0
    %921 = vmatpush1.msra.mxu0 0.0
    %922 = vmatprep.subr.mxu0 0.0
    %923 = vmatpush1.msra.mxu0 0.0
    %924 = vmatprep.subr.mxu0 0.0
    %925 = vmatpush1.msra.mxu0 0.0
    %926 = vmatprep.subr.mxu0 0.0
    %927 = vmatpush1.msra.mxu0 0.0
    %928 = vmatprep.subr.mxu0 0.0
    %929 = vmatpush1.msra.mxu0 0.0
    %930 = vmatprep.subr.mxu0 0.0
    %931 = vmatpush1.msra.mxu0 0.0
    %932 = vmatprep.subr.mxu0 0.0
    %933 = vmatpush1.msra.mxu0 0.0
    %934 = vmatprep.subr.mxu0 0.0
    %935 = vmatpush1.msra.mxu0 0.0
    %936 = vmatprep.subr.mxu0 0.0
    %937 = vmatpush1.msra.mxu0 0.0
    %938 = vmatprep.subr.mxu0 0.0
    %939 = vmatpush1.msra.mxu0 0.0
    %940 = vmatprep.subr.mxu0 0.0
    %941 = vmatpush1.msra.mxu0 0.0
    %942 = vmatprep.subr.mxu0 0.0
    %943 = vmatpush1.msra.mxu0 0.0
    %944 = vmatprep.subr.mxu0 0.0
    %945 = vmatpush1.msra.mxu0 0.0
    %946 = vmatprep.mubr.f32.mxu0 0.0
    %947 = vmatmul.mubr.f32.gmra.mrb[0].mxu0 %v879
    %v948 = vpop.f32.mrb[0].mxu0
    %v949 = vadd.f32 0.0, %v948
    %v950 = vpop.f32.mrb[0].mxu0
    %951 = vdwg.mxu0
    %v952 = vmul.f32 %v805, 0.001953125
    %v953 = vmul.f32 %v949, 0.001953125
    %v954 = vmul.f32 %v952, %v952
    %v955 = vsub.f32 %v953, %v954
    %v956 = vadd.f32 %v955, 1e-05
    %v957 = vrsqrt.pop %v956
    %v958 = vmul.f32 %v663, %v957
    %v959 = vmul.f32 %v952, %v958
    %v960 = vsub.f32 %v664, %v959
    %v962 = vlaneseq
    %v963 = vshrl.u32 %v962, 7
    %v964 = vsub.s32 0, %v963
    %v965 = vrot.slane %v958, %v964
    %v967 = vmul.f32 %v659, %v965
    %v968 = vmul.f32 %v660, %v965
    %v969 = vmul.f32 %v661, %v965
    %v970 = vmul.f32 %v662, %v965
    %v972 = vlaneseq
    %v973 = vshrl.u32 %v972, 7
    %v974 = vsub.s32 0, %v973
    %v975 = vrot.slane %v960, %v974
    %v977 = vadd.f32 %v967, %v975
    %v978 = vadd.f32 %v968, %v975
    %v979 = vadd.f32 %v969, %v975
    %v980 = vadd.f32 %v970, %v975
    %v981 = vmax.f32 %v977, 0.0
    %v982 = vmax.f32 %v978, 0.0
    %v983 = vmax.f32 %v979, 0.0
    %v984 = vmax.f32 %v980, 0.0
    %985 = vmatprep.subr.mxu0 0.0
    %986 = vmatpush1.msra.mxu0 %v981
    %987 = vmatprep.subr.mxu0 0.0
    %988 = vmatpush1.msra.mxu0 %v982
    %989 = vmatprep.subr.mxu0 0.0
    %990 = vmatpush1.msra.mxu0 %v983
    %991 = vmatprep.subr.mxu0 0.0
    %992 = vmatpush1.msra.mxu0 %v984
    %993 = vmatprep.subr.mxu0 0.0
    %994 = vmatpush1.msra.mxu0 0.0
    %995 = vmatprep.subr.mxu0 0.0
    %996 = vmatpush1.msra.mxu0 0.0
    %997 = vmatprep.subr.mxu0 0.0
    %998 = vmatpush1.msra.mxu0 0.0
    %999 = vmatprep.subr.mxu0 0.0
    %1000 = vmatpush1.msra.mxu0 0.0
    %1001 = vmatprep.subr.mxu0 0.0
    %1002 = vmatpush1.msra.mxu0 0.0
    %1003 = vmatprep.subr.mxu0 0.0
    %1004 = vmatpush1.msra.mxu0 0.0
    %1005 = vmatprep.subr.mxu0 0.0
    %1006 = vmatpush1.msra.mxu0 0.0
    %1007 = vmatprep.subr.mxu0 0.0
    %1008 = vmatpush1.msra.mxu0 0.0
    %1009 = vmatprep.subr.mxu0 0.0
    %1010 = vmatpush1.msra.mxu0 0.0
    %1011 = vmatprep.subr.mxu0 0.0
    %1012 = vmatpush1.msra.mxu0 0.0
    %1013 = vmatprep.subr.mxu0 0.0
    %1014 = vmatpush1.msra.mxu0 0.0
    %1015 = vmatprep.subr.mxu0 0.0
    %1016 = vmatpush1.msra.mxu0 0.0
    %1017 = vmatprep.subr.mxu0 0.0
    %1018 = vmatpush1.msra.mxu0 0.0
    %1019 = vmatprep.subr.mxu0 0.0
    %1020 = vmatpush1.msra.mxu0 0.0
    %1021 = vmatprep.subr.mxu0 0.0
    %1022 = vmatpush1.msra.mxu0 0.0
    %1023 = vmatprep.subr.mxu0 0.0
    %1024 = vmatpush1.msra.mxu0 0.0
    %1025 = vmatprep.subr.mxu0 0.0
    %1026 = vmatpush1.msra.mxu0 0.0
    %1027 = vmatprep.subr.mxu0 0.0
    %1028 = vmatpush1.msra.mxu0 0.0
    %1029 = vmatprep.subr.mxu0 0.0
    %1030 = vmatpush1.msra.mxu0 0.0
    %1031 = vmatprep.subr.mxu0 0.0
    %1032 = vmatpush1.msra.mxu0 0.0
    %1033 = vmatprep.subr.mxu0 0.0
    %1034 = vmatpush1.msra.mxu0 0.0
    %1035 = vmatprep.subr.mxu0 0.0
    %1036 = vmatpush1.msra.mxu0 0.0
    %1037 = vmatprep.subr.mxu0 0.0
    %1038 = vmatpush1.msra.mxu0 0.0
    %1039 = vmatprep.subr.mxu0 0.0
    %1040 = vmatpush1.msra.mxu0 0.0
    %1041 = vmatprep.subr.mxu0 0.0
    %1042 = vmatpush1.msra.mxu0 0.0
    %1043 = vmatprep.subr.mxu0 0.0
    %1044 = vmatpush1.msra.mxu0 0.0
    %1045 = vmatprep.subr.mxu0 0.0
    %1046 = vmatpush1.msra.mxu0 0.0
    %1047 = vmatprep.subr.mxu0 0.0
    %1048 = vmatpush1.msra.mxu0 0.0
    %1049 = vmatprep.mubr.f32.mxu0 0.0
    %1050 = vmatmul.mubr.f32.gmra.mrb[0].mxu0 %v148
    %v1051 = vpop.f32.mrb[0].mxu0
    %v1052 = vadd.f32 0.0, %v1051
    %v1053 = vpop.f32.mrb[0].mxu0
    %1054 = vmatprep.mubr.f32.mxu0 0.0
    %1055 = vmatmul.mubr.f32.gmra.mrb[0].mxu0 %v151
    %v1056 = vpop.f32.mrb[0].mxu0
    %v1057 = vadd.f32 0.0, %v1056
    %v1058 = vpop.f32.mrb[0].mxu0
    %1059 = vmatprep.mubr.f32.mxu0 0.0
    %1060 = vmatmul.mubr.f32.gmra.mrb[0].mxu0 %v154
    %v1061 = vpop.f32.mrb[0].mxu0
    %v1062 = vadd.f32 0.0, %v1061
    %v1063 = vpop.f32.mrb[0].mxu0
    %1064 = vmatprep.mubr.f32.mxu0 0.0
    %1065 = vmatmul.mubr.f32.gmra.mrb[0].mxu0 %v157
    %v1066 = vpop.f32.mrb[0].mxu0
    %v1067 = vadd.f32 0.0, %v1066
    %v1068 = vpop.f32.mrb[0].mxu0
    %1069 = vdwg.mxu0
    %1070 = vmatprep.subr.mxu0 0.0
    %1071 = vmatpush1.msra.mxu0 %v981
    %1072 = vmatprep.subr.mxu0 0.0
    %1073 = vmatpush1.msra.mxu0 %v982
    %1074 = vmatprep.subr.mxu0 0.0
    %1075 = vmatpush1.msra.mxu0 %v983
    %1076 = vmatprep.subr.mxu0 0.0
    %1077 = vmatpush1.msra.mxu0 %v984
    %1078 = vmatprep.subr.mxu0 0.0
    %1079 = vmatpush1.msra.mxu0 0.0
    %1080 = vmatprep.subr.mxu0 0.0
    %1081 = vmatpush1.msra.mxu0 0.0
    %1082 = vmatprep.subr.mxu0 0.0
    %1083 = vmatpush1.msra.mxu0 0.0
    %1084 = vmatprep.subr.mxu0 0.0
    %1085 = vmatpush1.msra.mxu0 0.0
    %1086 = vmatprep.subr.mxu0 0.0
    %1087 = vmatpush1.msra.mxu0 0.0
    %1088 = vmatprep.subr.mxu0 0.0
    %1089 = vmatpush1.msra.mxu0 0.0
    %1090 = vmatprep.subr.mxu0 0.0
    %1091 = vmatpush1.msra.mxu0 0.0
    %1092 = vmatprep.subr.mxu0 0.0
    %1093 = vmatpush1.msra.mxu0 0.0
    %1094 = vmatprep.subr.mxu0 0.0
    %1095 = vmatpush1.msra.mxu0 0.0
    %1096 = vmatprep.subr.mxu0 0.0
    %1097 = vmatpush1.msra.mxu0 0.0
    %1098 = vmatprep.subr.mxu0 0.0
    %1099 = vmatpush1.msra.mxu0 0.0
    %1100 = vmatprep.subr.mxu0 0.0
    %1101 = vmatpush1.msra.mxu0 0.0
    %1102 = vmatprep.subr.mxu0 0.0
    %1103 = vmatpush1.msra.mxu0 0.0
    %1104 = vmatprep.subr.mxu0 0.0
    %1105 = vmatpush1.msra.mxu0 0.0
    %1106 = vmatprep.subr.mxu0 0.0
    %1107 = vmatpush1.msra.mxu0 0.0
    %1108 = vmatprep.subr.mxu0 0.0
    %1109 = vmatpush1.msra.mxu0 0.0
    %1110 = vmatprep.subr.mxu0 0.0
    %1111 = vmatpush1.msra.mxu0 0.0
    %1112 = vmatprep.subr.mxu0 0.0
    %1113 = vmatpush1.msra.mxu0 0.0
    %1114 = vmatprep.subr.mxu0 0.0
    %1115 = vmatpush1.msra.mxu0 0.0
    %1116 = vmatprep.subr.mxu0 0.0
    %1117 = vmatpush1.msra.mxu0 0.0
    %1118 = vmatprep.subr.mxu0 0.0
    %1119 = vmatpush1.msra.mxu0 0.0
    %1120 = vmatprep.subr.mxu0 0.0
    %1121 = vmatpush1.msra.mxu0 0.0
    %1122 = vmatprep.subr.mxu0 0.0
    %1123 = vmatpush1.msra.mxu0 0.0
    %1124 = vmatprep.subr.mxu0 0.0
    %1125 = vmatpush1.msra.mxu0 0.0
    %1126 = vmatprep.subr.mxu0 0.0
    %1127 = vmatpush1.msra.mxu0 0.0
    %1128 = vmatprep.subr.mxu0 0.0
    %1129 = vmatpush1.msra.mxu0 0.0
    %1130 = vmatprep.subr.mxu0 0.0
    %1131 = vmatpush1.msra.mxu0 0.0
    %1132 = vmatprep.subr.mxu0 0.0
    %1133 = vmatpush1.msra.mxu0 0.0
    %1134 = vmatprep.mubr.f32.mxu0 0.0
    %1135 = vmatmul.mubr.f32.gmra.mrb[0].mxu0 %v245
    %v1136 = vpop.f32.mrb[0].mxu0
    %v1137 = vadd.f32 0.0, %v1136
    %v1138 = vpop.f32.mrb[0].mxu0
    %1139 = vmatprep.mubr.f32.mxu0 0.0
    %1140 = vmatmul.mubr.f32.gmra.mrb[0].mxu0 %v248
    %v1141 = vpop.f32.mrb[0].mxu0
    %v1142 = vadd.f32 0.0, %v1141
    %v1143 = vpop.f32.mrb[0].mxu0
    %1144 = vmatprep.mubr.f32.mxu0 0.0
    %1145 = vmatmul.mubr.f32.gmra.mrb[0].mxu0 %v251
    %v1146 = vpop.f32.mrb[0].mxu0
    %v1147 = vadd.f32 0.0, %v1146
    %v1148 = vpop.f32.mrb[0].mxu0
    %1149 = vmatprep.mubr.f32.mxu0 0.0
    %1150 = vmatmul.mubr.f32.gmra.mrb[0].mxu0 %v254
    %v1151 = vpop.f32.mrb[0].mxu0
    %v1152 = vadd.f32 0.0, %v1151
    %v1153 = vpop.f32.mrb[0].mxu0
    %1154 = vdwg.mxu0
    %v1155 = vld [vmem:[#allocation10] sm:$0xff]
    %v1156 = vld [vmem:[#allocation10 + $0x8] sm:$0xff]
    %v1157 = vld [vmem:[#allocation10 + $0x10] sm:$0xff]
    %v1158 = vld [vmem:[#allocation10 + $0x18] sm:$0xff]
    %v1159 = vld [vmem:[#allocation10 + $0x20] sm:$0xff]
    %v1160 = vld [vmem:[#allocation10 + $0x28] sm:$0xff]
    %v1161 = vld [vmem:[#allocation10 + $0x30] sm:$0xff]
    %v1162 = vld [vmem:[#allocation10 + $0x38] sm:$0xff]
    %v1163 = vld [vmem:[#allocation10 + $0x40] sm:$0xff]
    %v1164 = vld [vmem:[#allocation10 + $0x48] sm:$0xff]
    %v1165 = vld [vmem:[#allocation10 + $0x50] sm:$0xff]
    %v1166 = vld [vmem:[#allocation10 + $0x58] sm:$0xff]
    %v1167 = vld [vmem:[#allocation10 + $0x60] sm:$0xff]
    %v1168 = vld [vmem:[#allocation10 + $0x68] sm:$0xff]
    %v1169 = vld [vmem:[#allocation10 + $0x70] sm:$0xff]
    %v1170 = vld [vmem:[#allocation10 + $0x78] sm:$0xff]
    %s1171 = scalar_lea.vmem [#allocation10], 128
    %v1172 = vld [vmem:[%s1171] sm:$0xff]
    %v1173 = vld [vmem:[%s1171 + $0x8] sm:$0xff]
    %v1174 = vld [vmem:[%s1171 + $0x10] sm:$0xff]
    %v1175 = vld [vmem:[%s1171 + $0x18] sm:$0xff]
    %v1176 = vld [vmem:[%s1171 + $0x20] sm:$0xff]
    %v1177 = vld [vmem:[%s1171 + $0x28] sm:$0xff]
    %v1178 = vld [vmem:[%s1171 + $0x30] sm:$0xff]
    %v1179 = vld [vmem:[%s1171 + $0x38] sm:$0xff]
    %v1180 = vld [vmem:[%s1171 + $0x40] sm:$0xff]
    %v1181 = vld [vmem:[%s1171 + $0x48] sm:$0xff]
    %v1182 = vld [vmem:[%s1171 + $0x50] sm:$0xff]
    %v1183 = vld [vmem:[%s1171 + $0x58] sm:$0xff]
    %v1184 = vld [vmem:[%s1171 + $0x60] sm:$0xff]
    %v1185 = vld [vmem:[%s1171 + $0x68] sm:$0xff]
    %v1186 = vld [vmem:[%s1171 + $0x70] sm:$0xff]
    %v1187 = vld [vmem:[%s1171 + $0x78] sm:$0xff]
    %1188 = vmatprep.subr.mxu0 0.0
    %1189 = vmatpush1.msra.mxu0 %v1172
    %1190 = vmatprep.subr.mxu0 0.0
    %1191 = vmatpush1.msra.mxu0 %v1173
    %1192 = vmatprep.subr.mxu0 0.0
    %1193 = vmatpush1.msra.mxu0 %v1174
    %1194 = vmatprep.subr.mxu0 0.0
    %1195 = vmatpush1.msra.mxu0 %v1175
    %1196 = vmatprep.subr.mxu0 0.0
    %1197 = vmatpush1.msra.mxu0 %v1176
    %1198 = vmatprep.subr.mxu0 0.0
    %1199 = vmatpush1.msra.mxu0 %v1177
    %1200 = vmatprep.subr.mxu0 0.0
    %1201 = vmatpush1.msra.mxu0 %v1178
    %1202 = vmatprep.subr.mxu0 0.0
    %1203 = vmatpush1.msra.mxu0 %v1179
    %1204 = vmatprep.subr.mxu0 0.0
    %1205 = vmatpush1.msra.mxu0 %v1180
    %1206 = vmatprep.subr.mxu0 0.0
    %1207 = vmatpush1.msra.mxu0 %v1181
    %1208 = vmatprep.subr.mxu0 0.0
    %1209 = vmatpush1.msra.mxu0 %v1182
    %1210 = vmatprep.subr.mxu0 0.0
    %1211 = vmatpush1.msra.mxu0 %v1183
    %1212 = vmatprep.subr.mxu0 0.0
    %1213 = vmatpush1.msra.mxu0 %v1184
    %1214 = vmatprep.subr.mxu0 0.0
    %1215 = vmatpush1.msra.mxu0 %v1185
    %1216 = vmatprep.subr.mxu0 0.0
    %1217 = vmatpush1.msra.mxu0 %v1186
    %1218 = vmatprep.subr.mxu0 0.0
    %1219 = vmatpush1.msra.mxu0 %v1187
    %1220 = vmatprep.subr.mxu0 0.0
    %1221 = vmatpush1.msra.mxu0 0.0
    %1222 = vmatprep.subr.mxu0 0.0
    %1223 = vmatpush1.msra.mxu0 0.0
    %1224 = vmatprep.subr.mxu0 0.0
    %1225 = vmatpush1.msra.mxu0 0.0
    %1226 = vmatprep.subr.mxu0 0.0
    %1227 = vmatpush1.msra.mxu0 0.0
    %1228 = vmatprep.subr.mxu0 0.0
    %1229 = vmatpush1.msra.mxu0 0.0
    %1230 = vmatprep.subr.mxu0 0.0
    %1231 = vmatpush1.msra.mxu0 0.0
    %1232 = vmatprep.subr.mxu0 0.0
    %1233 = vmatpush1.msra.mxu0 0.0
    %1234 = vmatprep.subr.mxu0 0.0
    %1235 = vmatpush1.msra.mxu0 0.0
    %1236 = vmatprep.subr.mxu0 0.0
    %1237 = vmatpush1.msra.mxu0 0.0
    %1238 = vmatprep.subr.mxu0 0.0
    %1239 = vmatpush1.msra.mxu0 0.0
    %1240 = vmatprep.subr.mxu0 0.0
    %1241 = vmatpush1.msra.mxu0 0.0
    %1242 = vmatprep.subr.mxu0 0.0
    %1243 = vmatpush1.msra.mxu0 0.0
    %1244 = vmatprep.subr.mxu0 0.0
    %1245 = vmatpush1.msra.mxu0 0.0
    %1246 = vmatprep.subr.mxu0 0.0
    %1247 = vmatpush1.msra.mxu0 0.0
    %1248 = vmatprep.subr.mxu0 0.0
    %1249 = vmatpush1.msra.mxu0 0.0
    %1250 = vmatprep.subr.mxu0 0.0
    %1251 = vmatpush1.msra.mxu0 0.0
    %1252 = vmatprep.mubr.f32.mxu0 0.0
    %1253 = vmatmul.mubr.f32.gmra.mrb[0].mxu0 %v981
    %v1254 = vpop.f32.mrb[0].mxu0
    %v1255 = vadd.f32 0.0, %v1254
    %v1256 = vpop.f32.mrb[0].mxu0
    %1257 = vmatprep.mubr.f32.mxu0 0.0
    %1258 = vmatmul.mubr.f32.gmra.mrb[0].mxu0 %v982
    %v1259 = vpop.f32.mrb[0].mxu0
    %v1260 = vadd.f32 0.0, %v1259
    %v1261 = vpop.f32.mrb[0].mxu0
    %1262 = vmatprep.mubr.f32.mxu0 0.0
    %1263 = vmatmul.mubr.f32.gmra.mrb[0].mxu0 %v983
    %v1264 = vpop.f32.mrb[0].mxu0
    %v1265 = vadd.f32 0.0, %v1264
    %v1266 = vpop.f32.mrb[0].mxu0
    %1267 = vmatprep.mubr.f32.mxu0 0.0
    %1268 = vmatmul.mubr.f32.gmra.mrb[0].mxu0 %v984
    %v1269 = vpop.f32.mrb[0].mxu0
    %v1270 = vadd.f32 0.0, %v1269
    %v1271 = vpop.f32.mrb[0].mxu0
    %1272 = vdwg.mxu0
    %1273 = vmatprep.subr.mxu0 0.0
    %1274 = vmatpush1.msra.mxu0 %v1155
    %1275 = vmatprep.subr.mxu0 0.0
    %1276 = vmatpush1.msra.mxu0 %v1156
    %1277 = vmatprep.subr.mxu0 0.0
    %1278 = vmatpush1.msra.mxu0 %v1157
    %1279 = vmatprep.subr.mxu0 0.0
    %1280 = vmatpush1.msra.mxu0 %v1158
    %1281 = vmatprep.subr.mxu0 0.0
    %1282 = vmatpush1.msra.mxu0 %v1159
    %1283 = vmatprep.subr.mxu0 0.0
    %1284 = vmatpush1.msra.mxu0 %v1160
    %1285 = vmatprep.subr.mxu0 0.0
    %1286 = vmatpush1.msra.mxu0 %v1161
    %1287 = vmatprep.subr.mxu0 0.0
    %1288 = vmatpush1.msra.mxu0 %v1162
    %1289 = vmatprep.subr.mxu0 0.0
    %1290 = vmatpush1.msra.mxu0 %v1163
    %1291 = vmatprep.subr.mxu0 0.0
    %1292 = vmatpush1.msra.mxu0 %v1164
    %1293 = vmatprep.subr.mxu0 0.0
    %1294 = vmatpush1.msra.mxu0 %v1165
    %1295 = vmatprep.subr.mxu0 0.0
    %1296 = vmatpush1.msra.mxu0 %v1166
    %1297 = vmatprep.subr.mxu0 0.0
    %1298 = vmatpush1.msra.mxu0 %v1167
    %1299 = vmatprep.subr.mxu0 0.0
    %1300 = vmatpush1.msra.mxu0 %v1168
    %1301 = vmatprep.subr.mxu0 0.0
    %1302 = vmatpush1.msra.mxu0 %v1169
    %1303 = vmatprep.subr.mxu0 0.0
    %1304 = vmatpush1.msra.mxu0 %v1170
    %1305 = vmatprep.subr.mxu0 0.0
    %1306 = vmatpush1.msra.mxu0 0.0
    %1307 = vmatprep.subr.mxu0 0.0
    %1308 = vmatpush1.msra.mxu0 0.0
    %1309 = vmatprep.subr.mxu0 0.0
    %1310 = vmatpush1.msra.mxu0 0.0
    %1311 = vmatprep.subr.mxu0 0.0
    %1312 = vmatpush1.msra.mxu0 0.0
    %1313 = vmatprep.subr.mxu0 0.0
    %1314 = vmatpush1.msra.mxu0 0.0
    %1315 = vmatprep.subr.mxu0 0.0
    %1316 = vmatpush1.msra.mxu0 0.0
    %1317 = vmatprep.subr.mxu0 0.0
    %1318 = vmatpush1.msra.mxu0 0.0
    %1319 = vmatprep.subr.mxu0 0.0
    %1320 = vmatpush1.msra.mxu0 0.0
    %1321 = vmatprep.subr.mxu0 0.0
    %1322 = vmatpush1.msra.mxu0 0.0
    %1323 = vmatprep.subr.mxu0 0.0
    %1324 = vmatpush1.msra.mxu0 0.0
    %1325 = vmatprep.subr.mxu0 0.0
    %1326 = vmatpush1.msra.mxu0 0.0
    %1327 = vmatprep.subr.mxu0 0.0
    %1328 = vmatpush1.msra.mxu0 0.0
    %1329 = vmatprep.subr.mxu0 0.0
    %1330 = vmatpush1.msra.mxu0 0.0
    %1331 = vmatprep.subr.mxu0 0.0
    %1332 = vmatpush1.msra.mxu0 0.0
    %1333 = vmatprep.subr.mxu0 0.0
    %1334 = vmatpush1.msra.mxu0 0.0
    %1335 = vmatprep.subr.mxu0 0.0
    %1336 = vmatpush1.msra.mxu0 0.0
    %1337 = vmatprep.mubr.f32.mxu0 0.0
    %1338 = vmatmul.mubr.f32.gmra.mrb[0].mxu0 %v1052
    %v1339 = vpop.f32.mrb[0].mxu0
    %v1340 = vadd.f32 %v1255, %v1339
    %v1341 = vpop.f32.mrb[0].mxu0
    %1342 = vmatprep.mubr.f32.mxu0 0.0
    %1343 = vmatmul.mubr.f32.gmra.mrb[0].mxu0 %v1057
    %v1344 = vpop.f32.mrb[0].mxu0
    %v1345 = vadd.f32 %v1260, %v1344
    %v1346 = vpop.f32.mrb[0].mxu0
    %1347 = vmatprep.mubr.f32.mxu0 0.0
    %1348 = vmatmul.mubr.f32.gmra.mrb[0].mxu0 %v1062
    %v1349 = vpop.f32.mrb[0].mxu0
    %v1350 = vadd.f32 %v1265, %v1349
    %v1351 = vpop.f32.mrb[0].mxu0
    %1352 = vmatprep.mubr.f32.mxu0 0.0
    %1353 = vmatmul.mubr.f32.gmra.mrb[0].mxu0 %v1067
    %v1354 = vpop.f32.mrb[0].mxu0
    %v1355 = vadd.f32 %v1270, %v1354
    %v1356 = vpop.f32.mrb[0].mxu0
    %1357 = vdwg.mxu0
    %s1358 = scalar_lea.vmem [#allocation10], 256
    %v1359 = vld [vmem:[%s1358] sm:$0xff]
    %v1360 = vld [vmem:[%s1358 + $0x8] sm:$0xff]
    %v1361 = vld [vmem:[%s1358 + $0x10] sm:$0xff]
    %v1362 = vld [vmem:[%s1358 + $0x18] sm:$0xff]
    %v1363 = vld [vmem:[%s1358 + $0x20] sm:$0xff]
    %v1364 = vld [vmem:[%s1358 + $0x28] sm:$0xff]
    %v1365 = vld [vmem:[%s1358 + $0x30] sm:$0xff]
    %v1366 = vld [vmem:[%s1358 + $0x38] sm:$0xff]
    %v1367 = vld [vmem:[%s1358 + $0x40] sm:$0xff]
    %v1368 = vld [vmem:[%s1358 + $0x48] sm:$0xff]
    %v1369 = vld [vmem:[%s1358 + $0x50] sm:$0xff]
    %v1370 = vld [vmem:[%s1358 + $0x58] sm:$0xff]
    %v1371 = vld [vmem:[%s1358 + $0x60] sm:$0xff]
    %v1372 = vld [vmem:[%s1358 + $0x68] sm:$0xff]
    %v1373 = vld [vmem:[%s1358 + $0x70] sm:$0xff]
    %v1374 = vld [vmem:[%s1358 + $0x78] sm:$0xff]
    %1375 = vmatprep.subr.mxu0 0.0
    %1376 = vmatpush1.msra.mxu0 %v1359
    %1377 = vmatprep.subr.mxu0 0.0
    %1378 = vmatpush1.msra.mxu0 %v1360
    %1379 = vmatprep.subr.mxu0 0.0
    %1380 = vmatpush1.msra.mxu0 %v1361
    %1381 = vmatprep.subr.mxu0 0.0
    %1382 = vmatpush1.msra.mxu0 %v1362
    %1383 = vmatprep.subr.mxu0 0.0
    %1384 = vmatpush1.msra.mxu0 %v1363
    %1385 = vmatprep.subr.mxu0 0.0
    %1386 = vmatpush1.msra.mxu0 %v1364
    %1387 = vmatprep.subr.mxu0 0.0
    %1388 = vmatpush1.msra.mxu0 %v1365
    %1389 = vmatprep.subr.mxu0 0.0
    %1390 = vmatpush1.msra.mxu0 %v1366
    %1391 = vmatprep.subr.mxu0 0.0
    %1392 = vmatpush1.msra.mxu0 %v1367
    %1393 = vmatprep.subr.mxu0 0.0
    %1394 = vmatpush1.msra.mxu0 %v1368
    %1395 = vmatprep.subr.mxu0 0.0
    %1396 = vmatpush1.msra.mxu0 %v1369
    %1397 = vmatprep.subr.mxu0 0.0
    %1398 = vmatpush1.msra.mxu0 %v1370
    %1399 = vmatprep.subr.mxu0 0.0
    %1400 = vmatpush1.msra.mxu0 %v1371
    %1401 = vmatprep.subr.mxu0 0.0
    %1402 = vmatpush1.msra.mxu0 %v1372
    %1403 = vmatprep.subr.mxu0 0.0
    %1404 = vmatpush1.msra.mxu0 %v1373
    %1405 = vmatprep.subr.mxu0 0.0
    %1406 = vmatpush1.msra.mxu0 %v1374
    %1407 = vmatprep.subr.mxu0 0.0
    %1408 = vmatpush1.msra.mxu0 0.0
    %1409 = vmatprep.subr.mxu0 0.0
    %1410 = vmatpush1.msra.mxu0 0.0
    %1411 = vmatprep.subr.mxu0 0.0
    %1412 = vmatpush1.msra.mxu0 0.0
    %1413 = vmatprep.subr.mxu0 0.0
    %1414 = vmatpush1.msra.mxu0 0.0
    %1415 = vmatprep.subr.mxu0 0.0
    %1416 = vmatpush1.msra.mxu0 0.0
    %1417 = vmatprep.subr.mxu0 0.0
    %1418 = vmatpush1.msra.mxu0 0.0
    %1419 = vmatprep.subr.mxu0 0.0
    %1420 = vmatpush1.msra.mxu0 0.0
    %1421 = vmatprep.subr.mxu0 0.0
    %1422 = vmatpush1.msra.mxu0 0.0
    %1423 = vmatprep.subr.mxu0 0.0
    %1424 = vmatpush1.msra.mxu0 0.0
    %1425 = vmatprep.subr.mxu0 0.0
    %1426 = vmatpush1.msra.mxu0 0.0
    %1427 = vmatprep.subr.mxu0 0.0
    %1428 = vmatpush1.msra.mxu0 0.0
    %1429 = vmatprep.subr.mxu0 0.0
    %1430 = vmatpush1.msra.mxu0 0.0
    %1431 = vmatprep.subr.mxu0 0.0
    %1432 = vmatpush1.msra.mxu0 0.0
    %1433 = vmatprep.subr.mxu0 0.0
    %1434 = vmatpush1.msra.mxu0 0.0
    %1435 = vmatprep.subr.mxu0 0.0
    %1436 = vmatpush1.msra.mxu0 0.0
    %1437 = vmatprep.subr.mxu0 0.0
    %1438 = vmatpush1.msra.mxu0 0.0
    %1439 = vmatprep.mubr.f32.mxu0 0.0
    %1440 = vmatmul.mubr.f32.gmra.mrb[0].mxu0 %v1137
    %v1441 = vpop.f32.mrb[0].mxu0
    %v1442 = vadd.f32 0.0, %v1441
    %v1443 = vpop.f32.mrb[0].mxu0
    %1444 = vmatprep.mubr.f32.mxu0 0.0
    %1445 = vmatmul.mubr.f32.gmra.mrb[0].mxu0 %v1142
    %v1446 = vpop.f32.mrb[0].mxu0
    %v1447 = vadd.f32 0.0, %v1446
    %v1448 = vpop.f32.mrb[0].mxu0
    %1449 = vmatprep.mubr.f32.mxu0 0.0
    %1450 = vmatmul.mubr.f32.gmra.mrb[0].mxu0 %v1147
    %v1451 = vpop.f32.mrb[0].mxu0
    %v1452 = vadd.f32 0.0, %v1451
    %v1453 = vpop.f32.mrb[0].mxu0
    %1454 = vmatprep.mubr.f32.mxu0 0.0
    %1455 = vmatmul.mubr.f32.gmra.mrb[0].mxu0 %v1152
    %v1456 = vpop.f32.mrb[0].mxu0
    %v1457 = vadd.f32 0.0, %v1456
    %v1458 = vpop.f32.mrb[0].mxu0
    %1459 = vdwg.mxu0
    %v1460 = vadd.f32 %v1340, %v1442
    %v1461 = vadd.f32 %v1345, %v1447
    %v1462 = vadd.f32 %v1350, %v1452
    %v1463 = vadd.f32 %v1355, %v1457
    %v1464 = vld [vmem:[%s8] sm:$0x1]
    %v1465 = vld [vmem:[%s9] sm:$0x1]
    %1466 = vmatprep.subr.mxu0 0.0
    %1467 = vmatpush1.msra.mxu0 %v1460
    %1468 = vmatprep.subr.mxu0 0.0
    %1469 = vmatpush1.msra.mxu0 %v1461
    %1470 = vmatprep.subr.mxu0 0.0
    %1471 = vmatpush1.msra.mxu0 %v1462
    %1472 = vmatprep.subr.mxu0 0.0
    %1473 = vmatpush1.msra.mxu0 %v1463
    %1474 = vmatprep.subr.mxu0 0.0
    %1475 = vmatpush1.msra.mxu0 0.0
    %1476 = vmatprep.subr.mxu0 0.0
    %1477 = vmatpush1.msra.mxu0 0.0
    %1478 = vmatprep.subr.mxu0 0.0
    %1479 = vmatpush1.msra.mxu0 0.0
    %1480 = vmatprep.subr.mxu0 0.0
    %1481 = vmatpush1.msra.mxu0 0.0
    %1482 = vmatprep.subr.mxu0 0.0
    %1483 = vmatpush1.msra.mxu0 0.0
    %1484 = vmatprep.subr.mxu0 0.0
    %1485 = vmatpush1.msra.mxu0 0.0
    %1486 = vmatprep.subr.mxu0 0.0
    %1487 = vmatpush1.msra.mxu0 0.0
    %1488 = vmatprep.subr.mxu0 0.0
    %1489 = vmatpush1.msra.mxu0 0.0
    %1490 = vmatprep.subr.mxu0 0.0
    %1491 = vmatpush1.msra.mxu0 0.0
    %1492 = vmatprep.subr.mxu0 0.0
    %1493 = vmatpush1.msra.mxu0 0.0
    %1494 = vmatprep.subr.mxu0 0.0
    %1495 = vmatpush1.msra.mxu0 0.0
    %1496 = vmatprep.subr.mxu0 0.0
    %1497 = vmatpush1.msra.mxu0 0.0
    %1498 = vmatprep.subr.mxu0 0.0
    %1499 = vmatpush1.msra.mxu0 0.0
    %1500 = vmatprep.subr.mxu0 0.0
    %1501 = vmatpush1.msra.mxu0 0.0
    %1502 = vmatprep.subr.mxu0 0.0
    %1503 = vmatpush1.msra.mxu0 0.0
    %1504 = vmatprep.subr.mxu0 0.0
    %1505 = vmatpush1.msra.mxu0 0.0
    %1506 = vmatprep.subr.mxu0 0.0
    %1507 = vmatpush1.msra.mxu0 0.0
    %1508 = vmatprep.subr.mxu0 0.0
    %1509 = vmatpush1.msra.mxu0 0.0
    %1510 = vmatprep.subr.mxu0 0.0
    %1511 = vmatpush1.msra.mxu0 0.0
    %1512 = vmatprep.subr.mxu0 0.0
    %1513 = vmatpush1.msra.mxu0 0.0
    %1514 = vmatprep.subr.mxu0 0.0
    %1515 = vmatpush1.msra.mxu0 0.0
    %1516 = vmatprep.subr.mxu0 0.0
    %1517 = vmatpush1.msra.mxu0 0.0
    %1518 = vmatprep.subr.mxu0 0.0
    %1519 = vmatpush1.msra.mxu0 0.0
    %1520 = vmatprep.subr.mxu0 0.0
    %1521 = vmatpush1.msra.mxu0 0.0
    %1522 = vmatprep.subr.mxu0 0.0
    %1523 = vmatpush1.msra.mxu0 0.0
    %1524 = vmatprep.subr.mxu0 0.0
    %1525 = vmatpush1.msra.mxu0 0.0
    %1526 = vmatprep.subr.mxu0 0.0
    %1527 = vmatpush1.msra.mxu0 0.0
    %1528 = vmatprep.subr.mxu0 0.0
    %1529 = vmatpush1.msra.mxu0 0.0
    %1530 = vmatprep.mubr.f32.mxu0 0.0
    %1531 = vmatmul.mubr.f32.gmra.mrb[0].mxu0 %v666
    %v1532 = vpop.f32.mrb[0].mxu0
    %v1533 = vadd.f32 0.0, %v1532
    %v1534 = vpop.f32.mrb[0].mxu0
    %1535 = vdwg.mxu0
    %1536 = vmatprep.subr.mxu0 0.0
    %1537 = vmatpush1.msra.mxu0 %v126
    %1538 = vmatprep.subr.mxu0 0.0
    %1539 = vmatpush1.msra.mxu0 %v127
    %1540 = vmatprep.subr.mxu0 0.0
    %1541 = vmatpush1.msra.mxu0 %v128
    %1542 = vmatprep.subr.mxu0 0.0
    %1543 = vmatpush1.msra.mxu0 %v129
    %1544 = vmatprep.subr.mxu0 0.0
    %1545 = vmatpush1.msra.mxu0 %v130
    %1546 = vmatprep.subr.mxu0 0.0
    %1547 = vmatpush1.msra.mxu0 %v131
    %1548 = vmatprep.subr.mxu0 0.0
    %1549 = vmatpush1.msra.mxu0 %v132
    %1550 = vmatprep.subr.mxu0 0.0
    %1551 = vmatpush1.msra.mxu0 %v133
    %1552 = vmatprep.subr.mxu0 0.0
    %1553 = vmatpush1.msra.mxu0 %v134
    %1554 = vmatprep.subr.mxu0 0.0
    %1555 = vmatpush1.msra.mxu0 %v135
    %1556 = vmatprep.subr.mxu0 0.0
    %1557 = vmatpush1.msra.mxu0 %v136
    %1558 = vmatprep.subr.mxu0 0.0
    %1559 = vmatpush1.msra.mxu0 %v137
    %1560 = vmatprep.subr.mxu0 0.0
    %1561 = vmatpush1.msra.mxu0 %v138
    %1562 = vmatprep.subr.mxu0 0.0
    %1563 = vmatpush1.msra.mxu0 %v139
    %1564 = vmatprep.subr.mxu0 0.0
    %1565 = vmatpush1.msra.mxu0 %v140
    %1566 = vmatprep.subr.mxu0 0.0
    %1567 = vmatpush1.msra.mxu0 %v141
    %1568 = vmatprep.subr.mxu0 0.0
    %1569 = vmatpush1.msra.mxu0 0.0
    %1570 = vmatprep.subr.mxu0 0.0
    %1571 = vmatpush1.msra.mxu0 0.0
    %1572 = vmatprep.subr.mxu0 0.0
    %1573 = vmatpush1.msra.mxu0 0.0
    %1574 = vmatprep.subr.mxu0 0.0
    %1575 = vmatpush1.msra.mxu0 0.0
    %1576 = vmatprep.subr.mxu0 0.0
    %1577 = vmatpush1.msra.mxu0 0.0
    %1578 = vmatprep.subr.mxu0 0.0
    %1579 = vmatpush1.msra.mxu0 0.0
    %1580 = vmatprep.subr.mxu0 0.0
    %1581 = vmatpush1.msra.mxu0 0.0
    %1582 = vmatprep.subr.mxu0 0.0
    %1583 = vmatpush1.msra.mxu0 0.0
    %1584 = vmatprep.subr.mxu0 0.0
    %1585 = vmatpush1.msra.mxu0 0.0
    %1586 = vmatprep.subr.mxu0 0.0
    %1587 = vmatpush1.msra.mxu0 0.0
    %1588 = vmatprep.subr.mxu0 0.0
    %1589 = vmatpush1.msra.mxu0 0.0
    %1590 = vmatprep.subr.mxu0 0.0
    %1591 = vmatpush1.msra.mxu0 0.0
    %1592 = vmatprep.subr.mxu0 0.0
    %1593 = vmatpush1.msra.mxu0 0.0
    %1594 = vmatprep.subr.mxu0 0.0
    %1595 = vmatpush1.msra.mxu0 0.0
    %1596 = vmatprep.subr.mxu0 0.0
    %1597 = vmatpush1.msra.mxu0 0.0
    %1598 = vmatprep.subr.mxu0 0.0
    %1599 = vmatpush1.msra.mxu0 0.0
    %1600 = vmatprep.mubr.f32.mxu0 0.0
    %1601 = vmatmul.mubr.f32.gmra.mrb[0].mxu0 %v1533
    %v1602 = vpop.f32.mrb[0].mxu0
    %v1603 = vadd.f32 0.0, %v1602
    %v1604 = vpop.f32.mrb[0].mxu0
    %1605 = vdwg.mxu0
    %v1606 = vmul.f32 %v1460, %v1460
    %v1607 = vmul.f32 %v1461, %v1461
    %v1608 = vmul.f32 %v1462, %v1462
    %v1609 = vmul.f32 %v1463, %v1463
    %1610 = vmatprep.subr.mxu0 0.0
    %1611 = vmatpush1.msra.mxu0 %v1606
    %1612 = vmatprep.subr.mxu0 0.0
    %1613 = vmatpush1.msra.mxu0 %v1607
    %1614 = vmatprep.subr.mxu0 0.0
    %1615 = vmatpush1.msra.mxu0 %v1608
    %1616 = vmatprep.subr.mxu0 0.0
    %1617 = vmatpush1.msra.mxu0 %v1609
    %1618 = vmatprep.subr.mxu0 0.0
    %1619 = vmatpush1.msra.mxu0 0.0
    %1620 = vmatprep.subr.mxu0 0.0
    %1621 = vmatpush1.msra.mxu0 0.0
    %1622 = vmatprep.subr.mxu0 0.0
    %1623 = vmatpush1.msra.mxu0 0.0
    %1624 = vmatprep.subr.mxu0 0.0
    %1625 = vmatpush1.msra.mxu0 0.0
    %1626 = vmatprep.subr.mxu0 0.0
    %1627 = vmatpush1.msra.mxu0 0.0
    %1628 = vmatprep.subr.mxu0 0.0
    %1629 = vmatpush1.msra.mxu0 0.0
    %1630 = vmatprep.subr.mxu0 0.0
    %1631 = vmatpush1.msra.mxu0 0.0
    %1632 = vmatprep.subr.mxu0 0.0
    %1633 = vmatpush1.msra.mxu0 0.0
    %1634 = vmatprep.subr.mxu0 0.0
    %1635 = vmatpush1.msra.mxu0 0.0
    %1636 = vmatprep.subr.mxu0 0.0
    %1637 = vmatpush1.msra.mxu0 0.0
    %1638 = vmatprep.subr.mxu0 0.0
    %1639 = vmatpush1.msra.mxu0 0.0
    %1640 = vmatprep.subr.mxu0 0.0
    %1641 = vmatpush1.msra.mxu0 0.0
    %1642 = vmatprep.subr.mxu0 0.0
    %1643 = vmatpush1.msra.mxu0 0.0
    %1644 = vmatprep.subr.mxu0 0.0
    %1645 = vmatpush1.msra.mxu0 0.0
    %1646 = vmatprep.subr.mxu0 0.0
    %1647 = vmatpush1.msra.mxu0 0.0
    %1648 = vmatprep.subr.mxu0 0.0
    %1649 = vmatpush1.msra.mxu0 0.0
    %1650 = vmatprep.subr.mxu0 0.0
    %1651 = vmatpush1.msra.mxu0 0.0
    %1652 = vmatprep.subr.mxu0 0.0
    %1653 = vmatpush1.msra.mxu0 0.0
    %1654 = vmatprep.subr.mxu0 0.0
    %1655 = vmatpush1.msra.mxu0 0.0
    %1656 = vmatprep.subr.mxu0 0.0
    %1657 = vmatpush1.msra.mxu0 0.0
    %1658 = vmatprep.subr.mxu0 0.0
    %1659 = vmatpush1.msra.mxu0 0.0
    %1660 = vmatprep.subr.mxu0 0.0
    %1661 = vmatpush1.msra.mxu0 0.0
    %1662 = vmatprep.subr.mxu0 0.0
    %1663 = vmatpush1.msra.mxu0 0.0
    %1664 = vmatprep.subr.mxu0 0.0
    %1665 = vmatpush1.msra.mxu0 0.0
    %1666 = vmatprep.subr.mxu0 0.0
    %1667 = vmatpush1.msra.mxu0 0.0
    %1668 = vmatprep.subr.mxu0 0.0
    %1669 = vmatpush1.msra.mxu0 0.0
    %1670 = vmatprep.subr.mxu0 0.0
    %1671 = vmatpush1.msra.mxu0 0.0
    %1672 = vmatprep.subr.mxu0 0.0
    %1673 = vmatpush1.msra.mxu0 0.0
    %1674 = vmatprep.mubr.f32.mxu0 0.0
    %1675 = vmatmul.mubr.f32.gmra.mrb[0].mxu0 %v666
    %v1676 = vpop.f32.mrb[0].mxu0
    %v1677 = vadd.f32 0.0, %v1676
    %v1678 = vpop.f32.mrb[0].mxu0
    %1679 = vdwg.mxu0
    %1680 = vmatprep.subr.mxu0 0.0
    %1681 = vmatpush1.msra.mxu0 %v126
    %1682 = vmatprep.subr.mxu0 0.0
    %1683 = vmatpush1.msra.mxu0 %v127
    %1684 = vmatprep.subr.mxu0 0.0
    %1685 = vmatpush1.msra.mxu0 %v128
    %1686 = vmatprep.subr.mxu0 0.0
    %1687 = vmatpush1.msra.mxu0 %v129
    %1688 = vmatprep.subr.mxu0 0.0
    %1689 = vmatpush1.msra.mxu0 %v130
    %1690 = vmatprep.subr.mxu0 0.0
    %1691 = vmatpush1.msra.mxu0 %v131
    %1692 = vmatprep.subr.mxu0 0.0
    %1693 = vmatpush1.msra.mxu0 %v132
    %1694 = vmatprep.subr.mxu0 0.0
    %1695 = vmatpush1.msra.mxu0 %v133
    %1696 = vmatprep.subr.mxu0 0.0
    %1697 = vmatpush1.msra.mxu0 %v134
    %1698 = vmatprep.subr.mxu0 0.0
    %1699 = vmatpush1.msra.mxu0 %v135
    %1700 = vmatprep.subr.mxu0 0.0
    %1701 = vmatpush1.msra.mxu0 %v136
    %1702 = vmatprep.subr.mxu0 0.0
    %1703 = vmatpush1.msra.mxu0 %v137
    %1704 = vmatprep.subr.mxu0 0.0
    %1705 = vmatpush1.msra.mxu0 %v138
    %1706 = vmatprep.subr.mxu0 0.0
    %1707 = vmatpush1.msra.mxu0 %v139
    %1708 = vmatprep.subr.mxu0 0.0
    %1709 = vmatpush1.msra.mxu0 %v140
    %1710 = vmatprep.subr.mxu0 0.0
    %1711 = vmatpush1.msra.mxu0 %v141
    %1712 = vmatprep.subr.mxu0 0.0
    %1713 = vmatpush1.msra.mxu0 0.0
    %1714 = vmatprep.subr.mxu0 0.0
    %1715 = vmatpush1.msra.mxu0 0.0
    %1716 = vmatprep.subr.mxu0 0.0
    %1717 = vmatpush1.msra.mxu0 0.0
    %1718 = vmatprep.subr.mxu0 0.0
    %1719 = vmatpush1.msra.mxu0 0.0
    %1720 = vmatprep.subr.mxu0 0.0
    %1721 = vmatpush1.msra.mxu0 0.0
    %1722 = vmatprep.subr.mxu0 0.0
    %1723 = vmatpush1.msra.mxu0 0.0
    %1724 = vmatprep.subr.mxu0 0.0
    %1725 = vmatpush1.msra.mxu0 0.0
    %1726 = vmatprep.subr.mxu0 0.0
    %1727 = vmatpush1.msra.mxu0 0.0
    %1728 = vmatprep.subr.mxu0 0.0
    %1729 = vmatpush1.msra.mxu0 0.0
    %1730 = vmatprep.subr.mxu0 0.0
    %1731 = vmatpush1.msra.mxu0 0.0
    %1732 = vmatprep.subr.mxu0 0.0
    %1733 = vmatpush1.msra.mxu0 0.0
    %1734 = vmatprep.subr.mxu0 0.0
    %1735 = vmatpush1.msra.mxu0 0.0
    %1736 = vmatprep.subr.mxu0 0.0
    %1737 = vmatpush1.msra.mxu0 0.0
    %1738 = vmatprep.subr.mxu0 0.0
    %1739 = vmatpush1.msra.mxu0 0.0
    %1740 = vmatprep.subr.mxu0 0.0
    %1741 = vmatpush1.msra.mxu0 0.0
    %1742 = vmatprep.subr.mxu0 0.0
    %1743 = vmatpush1.msra.mxu0 0.0
    %1744 = vmatprep.mubr.f32.mxu0 0.0
    %1745 = vmatmul.mubr.f32.gmra.mrb[0].mxu0 %v1677
    %v1746 = vpop.f32.mrb[0].mxu0
    %v1747 = vadd.f32 0.0, %v1746
    %v1748 = vpop.f32.mrb[0].mxu0
    %1749 = vdwg.mxu0
    %v1750 = vmul.f32 %v1603, 0.001953125
    %v1751 = vmul.f32 %v1747, 0.001953125
    %v1752 = vmul.f32 %v1750, %v1750
    %v1753 = vsub.f32 %v1751, %v1752
    %v1754 = vadd.f32 %v1753, 1e-05
    %v1755 = vrsqrt.pop %v1754
    %v1756 = vmul.f32 %v1464, %v1755
    %v1757 = vmul.f32 %v1750, %v1756
    %v1758 = vsub.f32 %v1465, %v1757
    %v1760 = vlaneseq
    %v1761 = vshrl.u32 %v1760, 7
    %v1762 = vsub.s32 0, %v1761
    %v1763 = vrot.slane %v1756, %v1762
    %v1765 = vmul.f32 %v1460, %v1763
    %v1766 = vmul.f32 %v1461, %v1763
    %v1767 = vmul.f32 %v1462, %v1763
    %v1768 = vmul.f32 %v1463, %v1763
    %v1770 = vlaneseq
    %v1771 = vshrl.u32 %v1770, 7
    %v1772 = vsub.s32 0, %v1771
    %v1773 = vrot.slane %v1758, %v1772
    %v1775 = vadd.f32 %v1765, %v1773
    %v1776 = vadd.f32 %v1766, %v1773
    %v1777 = vadd.f32 %v1767, %v1773
    %v1778 = vadd.f32 %v1768, %v1773
    %v1779 = vmax.f32 %v1775, 0.0
    %v1780 = vmax.f32 %v1776, 0.0
    %v1781 = vmax.f32 %v1777, 0.0
    %v1782 = vmax.f32 %v1778, 0.0
    %1783 = vst [vmem:[#allocation13] sm:$0xff] %v1779
    %1784 = vst [vmem:[#allocation13 + $0x8] sm:$0xff] %v1780
    %1785 = vst [vmem:[#allocation13 + $0x10] sm:$0xff] %v1781
    %1786 = vst [vmem:[#allocation13 + $0x18] sm:$0xff] %v1782
    // Predicated region
    $region66: #{tpu_custom_call.1} parent=1 // pred_check
      _
    $region67: #{tpu_custom_call.1} parent=1 // pred_check_branch
      %1788 = sbr.rel (0) target = $region69
    $region68: #{tpu_custom_call.1} parent=1 // pred_region
      %s1790 = ssub.s32 512, 512
      %1791 = vsyncadd [#allocation4], %s1790
      %s1792 = sshll.u32 [#allocation13], 4
      %s1793 = int_to_ptr.vmem [resolvable:$true] %s1792
      %1798 = dma.vmem_to_hbm [thread:$0]  %s1793, 512, %s10, [#allocation4], 128, 128, 8
    $region69: #{tpu_custom_call.1} parent=1 // pred_fallthru
      _
    // Predicated region
    $region70: #{tpu_custom_call.1} parent=1 // pred_check
      _
    $region71: #{tpu_custom_call.1} parent=1 // pred_check_branch
      %1800 = sbr.rel (0) target = $region73
    $region72: #{tpu_custom_call.1} parent=1 // pred_region
      %1801 = dma.done [#allocation4], 512
    $region73: #{tpu_custom_call.1} parent=1 // pred_fallthru
      _
    %1802 = vsyncpa [#allocation3], 1
    %1803 = vsyncpa [#allocation6], 1
    %1804 = vsyncpa [#allocation9], 1
    %1805 = vsyncpa [#allocation12], 1
    %1806 = vsyncpa [#allocation4], 1

</llo_original>
